<compile_context>
chip_gen: v5e
topology: v5e:2x2
jax: 0.10.0
libtpu: 0.0.40
codegen_flags: <defaults>
</compile_context>

<pallas_src>
import functools

import jax
import jax.numpy as jnp
from jax.experimental import pallas as pl
from jax.experimental.pallas import tpu as pltpu


# ----------------------------------------------------------------------------
# Pallas kernel: out[b] = SiLU( Wfold[b] @ patches[b] + bias[b] )
#   p_ref: (1, K, tm)   w_ref: (1, Cout, K)   b_ref: (1, Cout, 1)
#   o_ref: (1, Cout, tm)   -- tm in the lane dim => unmasked stores
# ----------------------------------------------------------------------------
def _fused_convmm_kernel(p_ref, w_ref, b_ref, o_ref):
    acc = jnp.dot(w_ref[0], p_ref[0], preferred_element_type=jnp.float32)  # (Cout, tm)
    y = acc + b_ref[0]                       # folded-BN bias (lane broadcast)
    o_ref[0] = (y * jax.nn.sigmoid(y)).astype(o_ref.dtype)                 # SiLU


def _pick_tm(M, tm_max):
    """Largest multiple of 128 <= tm_max, capped so the M axis keeps >= 2 grid
    blocks when possible (keeps both v7x TensorCores busy)."""
    return max(128, min(tm_max, (M // 2 // 128) * 128))


def fused_conv_matmul(patches, weights, biases, *, tm_max=1024):
    """patches: (B, K, M) transposed im2col per branch.
       weights: (B, Cout, K) with the BN scale already folded in.
       biases:  (B, Cout, 1) folded BN bias (float32).
    Returns float32 (B, Cout, M) = SiLU(weights @ patches + biases)."""
    B, K, M = patches.shape
    Cout = weights.shape[1]
    tm = _pick_tm(M, tm_max)
    Mp = pl.cdiv(M, tm) * tm
    if Mp != M:  # pad the lane (M) dim up to a tile multiple; fused by XLA
        patches = jnp.pad(patches, ((0, 0), (0, 0), (0, Mp - M)))
    out = pl.pallas_call(
        _fused_convmm_kernel,
        out_shape=jax.ShapeDtypeStruct((B, Cout, Mp), jnp.float32),
        grid=(B, Mp // tm),
        in_specs=[
            pl.BlockSpec((1, K, tm), lambda b, j: (b, 0, j)),
            pl.BlockSpec((1, Cout, K), lambda b, j: (b, 0, 0)),
            pl.BlockSpec((1, Cout, 1), lambda b, j: (b, 0, 0)),
        ],
        out_specs=pl.BlockSpec((1, Cout, tm), lambda b, j: (b, 0, j)),
        compiler_params=pltpu.CompilerParams(
            dimension_semantics=("parallel", "parallel")),
    )(patches, weights, biases)
    return out[:, :, :M]


# ----------------------------------------------------------------------------
# Glue: asymmetric zero-padding + transposed im2col (pure data movement).
# ----------------------------------------------------------------------------
def _zpad(x, p):
    l, r, t, b = p  # PyTorch ZeroPad2d order: (left, right, top, bottom)
    return jnp.pad(x, ((0, 0), (0, 0), (t, b), (l, r)))


def _im2col_T(xp, kh, kw, stride):
    """xp: padded NCHW input -> patches^T of shape (C*kh*kw, N*Ho*Wo).
    K ordering is (cin, kh, kw), matching OIHW weight flattening."""
    N, C, Hp, Wp = xp.shape
    Ho = (Hp - kh) // stride + 1
    Wo = (Wp - kw) // stride + 1
    cols = []
    for i in range(kh):
        for j in range(kw):
            cols.append(
                xp[:, :,
                   i:i + (Ho - 1) * stride + 1:stride,
                   j:j + (Wo - 1) * stride + 1:stride])  # (N, C, Ho, Wo)
    col = jnp.stack(cols, axis=2)            # (N, C, kh*kw, Ho, Wo)
    col = col.transpose(1, 2, 0, 3, 4)       # (C, kh*kw, N, Ho, Wo)
    return col.reshape(C * kh * kw, N * Ho * Wo), Ho, Wo


def _fold_weight(w_oihw, bn_scale):
    """Fold BN scale into the conv weight; returns (Cout, Cin*kh*kw)."""
    Cout = w_oihw.shape[0]
    return w_oihw.reshape(Cout, -1) * bn_scale[:, None]


# ----------------------------------------------------------------------------
# PSConv parameters + forward
# ----------------------------------------------------------------------------
def init_psconv_params(key, c1, c2, k):
    assert c2 % 4 == 0
    c4 = c2 // 4
    ks = jax.random.split(key, 15)
    eps = 1e-3  # Ultralytics BatchNorm2d eps

    def bn_fold(kg, kb, km, kv, c):
        gamma = jax.random.uniform(kg, (c,), jnp.float32, 0.5, 1.5)
        beta = 0.1 * jax.random.normal(kb, (c,), dtype=jnp.float32)
        mean = 0.1 * jax.random.normal(km, (c,), dtype=jnp.float32)
        var = jax.random.uniform(kv, (c,), jnp.float32, 0.5, 1.5)
        scale = gamma / jnp.sqrt(var + eps)
        bias = beta - mean * scale
        return scale, bias

    w_cw = 0.1 * jax.random.normal(ks[0], (c4, c1, 1, k), dtype=jnp.float32)
    w_ch = 0.1 * jax.random.normal(ks[1], (c4, c1, k, 1), dtype=jnp.float32)
    w_cat = 0.1 * jax.random.normal(ks[2], (c2, c2, 2, 2), dtype=jnp.float32)
    s_cw, b_cw = bn_fold(ks[3], ks[4], ks[5], ks[6], c4)
    s_ch, b_ch = bn_fold(ks[7], ks[8], ks[9], ks[10], c4)
    s_cat, b_cat = bn_fold(ks[11], ks[12], ks[13], ks[14], c2)
    return dict(w_cw=w_cw, s_cw=s_cw, b_cw=b_cw,
                w_ch=w_ch, s_ch=s_ch, b_ch=b_ch,
                w_cat=w_cat, s_cat=s_cat, b_cat=b_cat)


@functools.partial(jax.jit, static_argnames=("k", "s", "compute_dtype"))
def psconv_forward(x, params, k, s, compute_dtype=jnp.float32):
    """x: (N, c1, H, W) NCHW float32 -> (N, c2, H//s, W//s) NCHW float32.
    compute_dtype=jnp.bfloat16 casts the matmul operands (accumulation and the
    SiLU epilogue stay in f32) — recommended on v6e/v7x."""
    N, c1, H, W = x.shape
    c4 = params["w_cw"].shape[0]
    c2 = 4 * c4

    pads = [(k, 0, 1, 0), (0, k, 0, 1), (0, 1, k, 0), (1, 0, 0, k)]
    kshapes = [(1, k), (1, k), (k, 1), (k, 1)]

    # ---- Stage 1: four pinwheel branch convs fused into ONE pallas_call ----
    patch_list = []
    Ho = Wo = None
    for g in range(4):
        pT, Ho, Wo = _im2col_T(_zpad(x, pads[g]), kshapes[g][0], kshapes[g][1], s)
        patch_list.append(pT)                    # each (c1*k, N*Ho*Wo)
    patches1 = jnp.stack(patch_list, axis=0)     # (4, c1*k, M)

    wf_cw = _fold_weight(params["w_cw"], params["s_cw"])   # (c4, c1*k)
    wf_ch = _fold_weight(params["w_ch"], params["s_ch"])   # (c4, c1*k)
    w1 = jnp.stack([wf_cw, wf_cw, wf_ch, wf_ch], axis=0)   # (4, c4, c1*k)
    b1 = jnp.stack([params["b_cw"], params["b_cw"],
                    params["b_ch"], params["b_ch"]], axis=0)[:, :, None]  # (4, c4, 1)

    y1 = fused_conv_matmul(patches1.astype(compute_dtype),
                           w1.astype(compute_dtype), b1)   # (4, c4, M), f32
    # Channel-major stacked output == concat([yw0, yw1, yh0, yh1], C) for free.
    ycat = y1.reshape(c2, N, Ho, Wo)                        # (c2, N, Ho, Wo)

    # ---- Stage 2: 2x2 "cat" conv, stride 1 ---------------------------------
    Hout, Wout = Ho - 1, Wo - 1
    cols2 = []
    for i in range(2):
        for j in range(2):
            cols2.append(ycat[:, :, i:i + Hout, j:j + Wout])  # (c2, N, Hout, Wout)
    p2 = jnp.stack(cols2, axis=1).reshape(c2 * 4, N * Hout * Wout)  # (K2, M2)
    w2 = _fold_weight(params["w_cat"], params["s_cat"])[None]       # (1, c2, K2)
    b2 = params["b_cat"][None, :, None]                             # (1, c2, 1)

    y2 = fused_conv_matmul(p2[None].astype(compute_dtype),
                           w2.astype(compute_dtype), b2)            # (1, c2, M2)
    out_cm = y2[0].reshape(c2, N, Hout, Wout)
    return out_cm.transpose(1, 0, 2, 3)   # single transpose back to NCHW


# ----------------------------------------------------------------------------
# Pure-JAX reference (lax.conv) for correctness checking.
# ----------------------------------------------------------------------------
def _conv_ref(x, w, scale, bias, stride):
    y = jax.lax.conv_general_dilated(
        x, w, window_strides=(stride, stride), padding="VALID",
        dimension_numbers=("NCHW", "OIHW", "NCHW"),
        precision=jax.lax.Precision.HIGHEST)
    y = y * scale[None, :, None, None] + bias[None, :, None, None]
    return y * jax.nn.sigmoid(y)


def psconv_ref(x, params, k, s):
    pads = [(k, 0, 1, 0), (0, k, 0, 1), (0, 1, k, 0), (1, 0, 0, k)]
    yw0 = _conv_ref(_zpad(x, pads[0]), params["w_cw"], params["s_cw"], params["b_cw"], s)
    yw1 = _conv_ref(_zpad(x, pads[1]), params["w_cw"], params["s_cw"], params["b_cw"], s)
    yh0 = _conv_ref(_zpad(x, pads[2]), params["w_ch"], params["s_ch"], params["b_ch"], s)
    yh1 = _conv_ref(_zpad(x, pads[3]), params["w_ch"], params["s_ch"], params["b_ch"], s)
    ycat = jnp.concatenate([yw0, yw1, yh0, yh1], axis=1)
    return _conv_ref(ycat, params["w_cat"], params["s_cat"], params["b_cat"], 1)


if __name__ == "__main__":
    c1, c2, k, s = 4, 16, 3, 1
    N, H, W = 2, 16, 16

    key = jax.random.PRNGKey(0)
    kx, kp = jax.random.split(key)
    x = jax.random.normal(kx, (N, c1, H, W), dtype=jnp.float32)
    params = init_psconv_params(kp, c1, c2, k)

    ref = psconv_ref(x, params, k, s)

    # Default f32 path (tight tolerance vs HIGHEST-precision reference).
    out = jax.block_until_ready(psconv_forward(x, params, k, s))
    assert out.shape == (N, c2, H // s, W // s), out.shape
    assert jnp.allclose(out, ref, atol=5e-3, rtol=5e-3), \
        float(jnp.max(jnp.abs(out - ref)))

    # bf16-operand path (recommended on v6e/v7x); f32 accumulation, looser tol.
    out_bf16 = jax.block_until_ready(
        psconv_forward(x, params, k, s, compute_dtype=jnp.bfloat16))
    assert jnp.allclose(out_bf16, ref, atol=5e-2, rtol=5e-2), \
        float(jnp.max(jnp.abs(out_bf16 - ref)))

    print("KERNEL_OK")
</pallas_src>

<mosaic_0001>
module attributes {stable_mosaic.version = 11 : i64} {
  func.func @_fused_convmm_kernel(%arg0: i32, %arg1: i32, %arg2: memref<1x12x256xf32, #tpu.memory_space<vmem>>, %arg3: memref<1x4x12xf32, #tpu.memory_space<vmem>>, %arg4: memref<1x4x1xf32, #tpu.memory_space<vmem>>, %arg5: memref<1x4x256xf32, #tpu.memory_space<vmem>>) attributes {dimension_semantics = [#tpu.dimension_semantics<parallel>, #tpu.dimension_semantics<parallel>], iteration_bounds = array<i64: 4, 3>, scalar_prefetch = 0 : i64, scratch_operands = 0 : i64, tpu.core_type = #tpu.core_type<tc>, window_params = [{transform_indices = @transform_0, window_bounds = array<i64: 1, 12, 256>}, {transform_indices = @transform_1, window_bounds = array<i64: 1, 4, 12>}, {transform_indices = @transform_2, window_bounds = array<i64: 1, 4, 1>}, {transform_indices = @transform_3, window_bounds = array<i64: 1, 4, 256>}]} {
    %c0 = arith.constant 0 : index
    %c0_0 = arith.constant 0 : index
    %c0_1 = arith.constant 0 : index
    %0 = vector.load %arg3[%c0, %c0_0, %c0_1] : memref<1x4x12xf32, #tpu.memory_space<vmem>>, vector<1x4x12xf32>
    %1 = vector.shape_cast %0 : vector<1x4x12xf32> to vector<4x12xf32>
    %c0_2 = arith.constant 0 : index
    %c0_3 = arith.constant 0 : index
    %c0_4 = arith.constant 0 : index
    %2 = vector.load %arg2[%c0_2, %c0_3, %c0_4] : memref<1x12x256xf32, #tpu.memory_space<vmem>>, vector<1x12x256xf32>
    %3 = vector.shape_cast %2 : vector<1x12x256xf32> to vector<12x256xf32>
    %cst = arith.constant dense<0.000000e+00> : vector<4x256xf32>
    %4 = tpu.matmul %1, %3, %cst {dimension_numbers = #tpu.dot_dimension_numbers<[1], [0], [0], [1], [0, 0, 1, 1], [], []>} : vector<4x12xf32>, vector<12x256xf32>, vector<4x256xf32> -> vector<4x256xf32>
    %c0_5 = arith.constant 0 : index
    %c0_6 = arith.constant 0 : index
    %c0_7 = arith.constant 0 : index
    %5 = vector.load %arg4[%c0_5, %c0_6, %c0_7] : memref<1x4x1xf32, #tpu.memory_space<vmem>>, vector<1x4x1xf32>
    %6 = vector.shape_cast %5 : vector<1x4x1xf32> to vector<4x1xf32>
    %7 = vector.broadcast %6 : vector<4x1xf32> to vector<4x256xf32>
    %8 = arith.addf %4, %7 : vector<4x256xf32>
    %9 = arith.negf %8 : vector<4x256xf32>
    %10 = math.exp %9 : vector<4x256xf32>
    %cst_8 = arith.constant 1.000000e+00 : f32
    %11 = vector.broadcast %cst_8 : f32 to vector<4x256xf32>
    %12 = arith.addf %11, %10 : vector<4x256xf32>
    %13 = arith.divf %11, %12 : vector<4x256xf32>
    %14 = arith.mulf %8, %13 : vector<4x256xf32>
    %c0_9 = arith.constant 0 : index
    %c0_10 = arith.constant 0 : index
    %c0_11 = arith.constant 0 : index
    %15 = vector.load %arg5[%c0_9, %c0_10, %c0_11] : memref<1x4x256xf32, #tpu.memory_space<vmem>>, vector<1x4x256xf32>
    %16 = vector.shape_cast %15 : vector<1x4x256xf32> to vector<4x256xf32>
    %17 = vector.shape_cast %14 : vector<4x256xf32> to vector<1x4x256xf32>
    tpu.vector_store %arg5[%c0_9, %c0_10, %c0_11], %17 {strides = array<i32>} : memref<1x4x256xf32, #tpu.memory_space<vmem>>, vector<1x4x256xf32>,
    return
  }
  func.func @transform_0(%arg0: i32, %arg1: i32) -> (i32, i32, i32) {
    %c0_i32 = arith.constant 0 : i32
    %c0_i32_0 = arith.constant 0 : i32
    return %arg0, %c0_i32, %arg1 : i32, i32, i32
  }
  func.func @transform_1(%arg0: i32, %arg1: i32) -> (i32, i32, i32) {
    %c0_i32 = arith.constant 0 : i32
    %c0_i32_0 = arith.constant 0 : i32
    %c0_i32_1 = arith.constant 0 : i32
    return %arg0, %c0_i32, %c0_i32_0 : i32, i32, i32
  }
  func.func @transform_2(%arg0: i32, %arg1: i32) -> (i32, i32, i32) {
    %c0_i32 = arith.constant 0 : i32
    %c0_i32_0 = arith.constant 0 : i32
    %c0_i32_1 = arith.constant 0 : i32
    return %arg0, %c0_i32, %c0_i32_0 : i32, i32, i32
  }
  func.func @transform_3(%arg0: i32, %arg1: i32) -> (i32, i32, i32) {
    %c0_i32 = arith.constant 0 : i32
    %c0_i32_0 = arith.constant 0 : i32
    return %arg0, %c0_i32, %arg1 : i32, i32, i32
  }
}

module attributes {stable_mosaic.version = 11 : i64} {
  func.func @_fused_convmm_kernel(%arg0: i32, %arg1: i32, %arg2: memref<1x64x256xf32, #tpu.memory_space<vmem>>, %arg3: memref<1x16x64xf32, #tpu.memory_space<vmem>>, %arg4: memref<1x16x1xf32, #tpu.memory_space<vmem>>, %arg5: memref<1x16x256xf32, #tpu.memory_space<vmem>>) attributes {dimension_semantics = [#tpu.dimension_semantics<parallel>, #tpu.dimension_semantics<parallel>], iteration_bounds = array<i64: 1, 2>, scalar_prefetch = 0 : i64, scratch_operands = 0 : i64, tpu.core_type = #tpu.core_type<tc>, window_params = [{transform_indices = @transform_0, window_bounds = array<i64: 1, 64, 256>}, {transform_indices = @transform_1, window_bounds = array<i64: 1, 16, 64>}, {transform_indices = @transform_2, window_bounds = array<i64: 1, 16, 1>}, {transform_indices = @transform_3, window_bounds = array<i64: 1, 16, 256>}]} {
    %c0 = arith.constant 0 : index
    %c0_0 = arith.constant 0 : index
    %c0_1 = arith.constant 0 : index
    %0 = vector.load %arg3[%c0, %c0_0, %c0_1] : memref<1x16x64xf32, #tpu.memory_space<vmem>>, vector<1x16x64xf32>
    %1 = vector.shape_cast %0 : vector<1x16x64xf32> to vector<16x64xf32>
    %c0_2 = arith.constant 0 : index
    %c0_3 = arith.constant 0 : index
    %c0_4 = arith.constant 0 : index
    %2 = vector.load %arg2[%c0_2, %c0_3, %c0_4] : memref<1x64x256xf32, #tpu.memory_space<vmem>>, vector<1x64x256xf32>
    %3 = vector.shape_cast %2 : vector<1x64x256xf32> to vector<64x256xf32>
    %cst = arith.constant dense<0.000000e+00> : vector<16x256xf32>
    %4 = tpu.matmul %1, %3, %cst {dimension_numbers = #tpu.dot_dimension_numbers<[1], [0], [0], [1], [0, 0, 1, 1], [], []>} : vector<16x64xf32>, vector<64x256xf32>, vector<16x256xf32> -> vector<16x256xf32>
    %c0_5 = arith.constant 0 : index
    %c0_6 = arith.constant 0 : index
    %c0_7 = arith.constant 0 : index
    %5 = vector.load %arg4[%c0_5, %c0_6, %c0_7] : memref<1x16x1xf32, #tpu.memory_space<vmem>>, vector<1x16x1xf32>
    %6 = vector.shape_cast %5 : vector<1x16x1xf32> to vector<16x1xf32>
    %7 = vector.broadcast %6 : vector<16x1xf32> to vector<16x256xf32>
    %8 = arith.addf %4, %7 : vector<16x256xf32>
    %9 = arith.negf %8 : vector<16x256xf32>
    %10 = math.exp %9 : vector<16x256xf32>
    %cst_8 = arith.constant 1.000000e+00 : f32
    %11 = vector.broadcast %cst_8 : f32 to vector<16x256xf32>
    %12 = arith.addf %11, %10 : vector<16x256xf32>
    %13 = arith.divf %11, %12 : vector<16x256xf32>
    %14 = arith.mulf %8, %13 : vector<16x256xf32>
    %c0_9 = arith.constant 0 : index
    %c0_10 = arith.constant 0 : index
    %c0_11 = arith.constant 0 : index
    %15 = vector.load %arg5[%c0_9, %c0_10, %c0_11] : memref<1x16x256xf32, #tpu.memory_space<vmem>>, vector<1x16x256xf32>
    %16 = vector.shape_cast %15 : vector<1x16x256xf32> to vector<16x256xf32>
    %17 = vector.shape_cast %14 : vector<16x256xf32> to vector<1x16x256xf32>
    tpu.vector_store %arg5[%c0_9, %c0_10, %c0_11], %17 {strides = array<i32>} : memref<1x16x256xf32, #tpu.memory_space<vmem>>, vector<1x16x256xf32>,
    return
  }
  func.func @transform_0(%arg0: i32, %arg1: i32) -> (i32, i32, i32) {
    %c0_i32 = arith.constant 0 : i32
    %c0_i32_0 = arith.constant 0 : i32
    return %arg0, %c0_i32, %arg1 : i32, i32, i32
  }
  func.func @transform_1(%arg0: i32, %arg1: i32) -> (i32, i32, i32) {
    %c0_i32 = arith.constant 0 : i32
    %c0_i32_0 = arith.constant 0 : i32
    %c0_i32_1 = arith.constant 0 : i32
    return %arg0, %c0_i32, %c0_i32_0 : i32, i32, i32
  }
  func.func @transform_2(%arg0: i32, %arg1: i32) -> (i32, i32, i32) {
    %c0_i32 = arith.constant 0 : i32
    %c0_i32_0 = arith.constant 0 : i32
    %c0_i32_1 = arith.constant 0 : i32
    return %arg0, %c0_i32, %c0_i32_0 : i32, i32, i32
  }
  func.func @transform_3(%arg0: i32, %arg1: i32) -> (i32, i32, i32) {
    %c0_i32 = arith.constant 0 : i32
    %c0_i32_0 = arith.constant 0 : i32
    return %arg0, %c0_i32, %arg1 : i32, i32, i32
  }
}

</mosaic_0001>

<llo_original>
// kernel: psconv_forward.2
$region0: #{psconv_forward.2}
  #allocation0 [shape = 'u32[]', space=smem, size = 0x4, offset = 0x4, fixed_abs, tag = 'smem constant byte address 0x4 - core index']
  #allocation1 [shape = 'u32[72,128]{1,0:T(1,128)}', space=vmem, size = 0x9000, scoped, tag = 'internal scratch']
  %s0 = inlined_call_operand.vmem [shape: f32[4,12,768], index: 0, kind: input, shape index: {}]
  %s1 = inlined_call_operand.vmem [shape: f32[4,4,12], index: 1, kind: input, shape index: {}]
  %s2 = inlined_call_operand.vmem [shape: f32[4,4,1], index: 2, kind: input, shape index: {}]
  %s3 = inlined_call_operand.vmem [shape: f32[4,4,768], index: 3, kind: output, shape index: {}]
  %s4 = sld [smem:[#allocation0]]
  $region68: #{psconv_forward.2} parent=0
    _
  %s6 = ssub.s32 1, %s4
  %s7 = scalar_select 0, %s6, %s4
  $region1: #{psconv_forward.2} parent=0
    #allocation2 [shape = 'u8[32768]{0}', space=vmem, size = 0x8000, scoped, tag = 'input window, operand 0']
    loop: start=0, step=1, limit=14
    $region2: #{psconv_forward.2} parent=1 // loop_pre_header
      _
    $region3: #{psconv_forward.2} parent=1 // loop_header
      %s9 = sphi 0, %s13
      %p10 = scmp.ge.s32.totalorder %s9, 14
      %s16 = sphi 0, %s28
      %s17 = sphi 0, %s24
      %s18 = sphi 0, %s16
      %s19 = sphi 0, %s17
      %s20 = sphi 0, %s18
      %s21 = sphi 0, %s19
      %s33 = sphi 0, %s35
      %s36 = sphi 0, %s33
      %s37 = sphi 0, %s36
      %s53 = sphi 0, %s37
      %s59 = sphi 0, %s61
      %s62 = sphi 0, %s59
      %s63 = sphi 0, %s62
      %s79 = sphi 0, %s63
      %s85 = sphi 0, %s87
      %s88 = sphi 0, %s85
      %s89 = sphi 0, %s88
      %s105 = sphi 0, %s89
      %s113 = sphi 0, %s115
      %s116 = sphi 0, %s113
      %s117 = sphi 0, %s116
      %s133 = sphi 0, %s117
    $region4: #{psconv_forward.2} parent=1 // loop_header_branch
      %12 = sbr.rel (%p10) target = $region8
    $region5: #{psconv_forward.2} parent=1 // loop_body
      %s14 = ssub.s32 %s9, 1
      %s15 = ssub.s32 %s9, 2
      %s22 = sadd.s32 1, %s17
      %p23 = scmp.ge.s32.totalorder %s22, 3
      %s24 = scalar_select %p23, 0, %s22
      %s25 = sadd.s32 1, %s16
      %s26 = scalar_select %p23, %s25, %s16
      %p27 = scmp.ge.s32.totalorder %s26, 4
      %s28 = scalar_select %p27, 0, %s26
      %s29 = ssub.s32 %s16, %s28
      %s30 = ssub.s32 %s17, %s24
      %s31 = sor.u32 %s29, %s30
      %p32 = scmp.eq.s32.totalorder %s31, 0
      %s34 = sadd.s32 %s33, 1
      %s35 = scalar_select %p32, %s33, %s34
      %p38 = pneg %p32
      %p39 = scmp.eq.s32.totalorder %s9, 11
      %p40 = por %p38, %p39
      %p41 = scmp.ne.s32.totalorder %s33, %s36
      %p42 = scmp.eq.s32.totalorder %s9, 0
      %p43 = por %p41, %p42
      %p44 = scmp.ne.s32.totalorder %s33, %s36
      %p45 = scmp.eq.s32.totalorder %s14, 11
      %p46 = por %p44, %p45
      %p47 = scmp.ne.s32.totalorder %s36, %s37
      %p48 = scmp.eq.s32.totalorder %s14, 0
      %p49 = por %p47, %p48
      %p50 = scmp.ne.s32.totalorder %s36, %s37
      %p51 = scmp.eq.s32.totalorder %s15, 11
      %p52 = por %p50, %p51
      %p54 = scmp.ne.s32.totalorder %s37, %s53
      %p55 = scmp.eq.s32.totalorder %s15, 0
      %p56 = por %p54, %p55
      %s57 = ssub.s32 %s16, %s28
      %p58 = scmp.eq.s32.totalorder %s57, 0
      %s60 = sadd.s32 %s59, 1
      %s61 = scalar_select %p58, %s59, %s60
      %p64 = pneg %p58
      %p65 = scmp.eq.s32.totalorder %s9, 11
      %p66 = por %p64, %p65
      %p67 = scmp.ne.s32.totalorder %s59, %s62
      %p68 = scmp.eq.s32.totalorder %s9, 0
      %p69 = por %p67, %p68
      %p70 = scmp.ne.s32.totalorder %s59, %s62
      %p71 = scmp.eq.s32.totalorder %s14, 11
      %p72 = por %p70, %p71
      %p73 = scmp.ne.s32.totalorder %s62, %s63
      %p74 = scmp.eq.s32.totalorder %s14, 0
      %p75 = por %p73, %p74
      %p76 = scmp.ne.s32.totalorder %s62, %s63
      %p77 = scmp.eq.s32.totalorder %s15, 11
      %p78 = por %p76, %p77
      %p80 = scmp.ne.s32.totalorder %s63, %s79
      %p81 = scmp.eq.s32.totalorder %s15, 0
      %p82 = por %p80, %p81
      %s83 = ssub.s32 %s16, %s28
      %p84 = scmp.eq.s32.totalorder %s83, 0
      %s86 = sadd.s32 %s85, 1
      %s87 = scalar_select %p84, %s85, %s86
      %p90 = pneg %p84
      %p91 = scmp.eq.s32.totalorder %s9, 11
      %p92 = por %p90, %p91
      %p93 = scmp.ne.s32.totalorder %s85, %s88
      %p94 = scmp.eq.s32.totalorder %s9, 0
      %p95 = por %p93, %p94
      %p96 = scmp.ne.s32.totalorder %s85, %s88
      %p97 = scmp.eq.s32.totalorder %s14, 11
      %p98 = por %p96, %p97
      %p99 = scmp.ne.s32.totalorder %s88, %s89
      %p100 = scmp.eq.s32.totalorder %s14, 0
      %p101 = por %p99, %p100
      %p102 = scmp.ne.s32.totalorder %s88, %s89
      %p103 = scmp.eq.s32.totalorder %s15, 11
      %p104 = por %p102, %p103
      %p106 = scmp.ne.s32.totalorder %s89, %s105
      %p107 = scmp.eq.s32.totalorder %s15, 0
      %p108 = por %p106, %p107
      %s109 = ssub.s32 %s16, %s28
      %s110 = ssub.s32 %s17, %s24
      %s111 = sor.u32 %s109, %s110
      %p112 = scmp.eq.s32.totalorder %s111, 0
      %s114 = sadd.s32 %s113, 1
      %s115 = scalar_select %p112, %s113, %s114
      %p118 = pneg %p112
      %p119 = scmp.eq.s32.totalorder %s9, 11
      %p120 = por %p118, %p119
      %p121 = scmp.ne.s32.totalorder %s113, %s116
      %p122 = scmp.eq.s32.totalorder %s9, 0
      %p123 = por %p121, %p122
      %p124 = scmp.ne.s32.totalorder %s113, %s116
      %p125 = scmp.eq.s32.totalorder %s14, 11
      %p126 = por %p124, %p125
      %p127 = scmp.ne.s32.totalorder %s116, %s117
      %p128 = scmp.eq.s32.totalorder %s14, 0
      %p129 = por %p127, %p128
      %p130 = scmp.ne.s32.totalorder %s116, %s117
      %p131 = scmp.eq.s32.totalorder %s15, 11
      %p132 = por %p130, %p131
      %p134 = scmp.ne.s32.totalorder %s117, %s133
      %p135 = scmp.eq.s32.totalorder %s15, 0
      %p136 = por %p134, %p135
      %p137 = scmp.le.s32.totalorder 1, %s9
      %p138 = scmp.lt.s32.totalorder %s9, 13
      %p139 = pnand %p137, %p138
      %p140 = pneg %p139
      // Predicated region
      $region9: #{psconv_forward.2} parent=5 // pred_check
        _
      $region10: #{psconv_forward.2} parent=5 // pred_check_branch
        %142 = sbr.rel (%p139) target = $region12
      $region11: #{psconv_forward.2} parent=5 // pred_region
        %s143 = ssub.s32 %s9, 1
      $region12: #{psconv_forward.2} parent=5 // pred_fallthru
        _
      %p144 = scmp.lt.s32.totalorder %s9, 12
      // Predicated region
      $region13: #{psconv_forward.2} parent=5 // pred_check
        %p145 = pneg %p144
      $region14: #{psconv_forward.2} parent=5 // pred_check_branch
        %147 = sbr.rel (%p145) target = $region16
      $region15: #{psconv_forward.2} parent=5 // pred_region
        // Predicated region
        $region17: #{psconv_forward.2} parent=15 // pred_check
          %p148 = pneg %p43
        $region18: #{psconv_forward.2} parent=15 // pred_check_branch
          %150 = sbr.rel (%p148) target = $region20
        $region19: #{psconv_forward.2} parent=15 // pred_region
          %s151 = sand.u32 %s33, 1
          %s152 = sand.u32 %s33, 1
          %s153 = smul.addr %s152, 32
          %s154 = scalar_lea.vmem [#allocation2], %s153
          %s155 = smul.u32 2, %s17
          %s156 = smul.addr %s16, 12
          %s157 = sadd.s32 %s155, %s156
          %s158 = smul.addr %s157, 8
          %s159 = scalar_lea.vmem %s0, %s158
          // Predicated region
          $region21: #{psconv_forward.2} parent=19 // pred_check
            _
          $region22: #{psconv_forward.2} parent=19 // pred_check_branch
            %161 = sbr.rel (0) target = $region24
          $region23: #{psconv_forward.2} parent=19 // pred_region
            // Predicated region
            $region25: #{psconv_forward.2} parent=23 // pred_check
              _
            $region26: #{psconv_forward.2} parent=23 // pred_check_branch
              %163 = sbr.rel (0) target = $region28
            $region27: #{psconv_forward.2} parent=23 // pred_region
              loop: start=0, step=1, limit=1
              $region29: #{psconv_forward.2} parent=27 // loop_pre_header
                _
              $region30: #{psconv_forward.2} parent=27 // loop_header
                %s165 = sphi 0, %s169
                %p166 = scmp.ge.s32.totalorder %s165, 1
                %s170 = sphi %s159, %s159
                %s171 = sphi %s154, %s154
              $region31: #{psconv_forward.2} parent=27 // loop_header_branch
                %168 = sbr.rel (%p166) target = $region35
              $region32: #{psconv_forward.2} parent=27 // loop_body
                %v172 = vld [vmem:[%s170] sm:$0xff]
                %173 = vst [vmem:[%s171] sm:$0xff] %v172
                %v174 = vld [vmem:[%s170 + $0x8] sm:$0xff]
                %175 = vst [vmem:[%s171 + $0x8] sm:$0xff] %v174
                %v176 = vld [vmem:[%s170 + $0x30] sm:$0xff]
                %177 = vst [vmem:[%s171 + $0x10] sm:$0xff] %v176
                %v178 = vld [vmem:[%s170 + $0x38] sm:$0xff]
                %179 = vst [vmem:[%s171 + $0x18] sm:$0xff] %v178
              $region33: #{psconv_forward.2} parent=27 // loop_footer
                %s169 = sadd.s32 1, %s165
              $region34: #{psconv_forward.2} parent=27 // loop_footer_branch
                %164 = sbr.rel target = $region30
              $region35: #{psconv_forward.2} parent=27 // loop_exit
                _
            $region28: #{psconv_forward.2} parent=23 // pred_fallthru
              _
            // Predicated region
            $region36: #{psconv_forward.2} parent=23 // pred_check
              _
            $region37: #{psconv_forward.2} parent=23 // pred_check_branch
              %181 = sbr.rel target = $region39
            $region38: #{psconv_forward.2} parent=23 // pred_region
              _
            $region39: #{psconv_forward.2} parent=23 // pred_fallthru
              _
          $region24: #{psconv_forward.2} parent=19 // pred_fallthru
            _
          %182 = vnop
        $region20: #{psconv_forward.2} parent=15 // pred_fallthru
          _
        // Predicated region
        $region40: #{psconv_forward.2} parent=15 // pred_check
          %p183 = pneg %p69
        $region41: #{psconv_forward.2} parent=15 // pred_check_branch
          %185 = sbr.rel (%p183) target = $region43
        $region42: #{psconv_forward.2} parent=15 // pred_region
          %p186 = scmp.lt.s32.totalorder %s16, 3
          %s187 = scalar_select %p186, %s16, 3
          %s188 = smul.addr %s187, 4
          %s189 = scalar_lea.vmem %s1, %s188
        $region43: #{psconv_forward.2} parent=15 // pred_fallthru
          _
        // Predicated region
        $region44: #{psconv_forward.2} parent=15 // pred_check
          %p190 = pneg %p95
        $region45: #{psconv_forward.2} parent=15 // pred_check_branch
          %192 = sbr.rel (%p190) target = $region47
        $region46: #{psconv_forward.2} parent=15 // pred_region
          %p193 = scmp.lt.s32.totalorder %s16, 3
          %s194 = scalar_select %p193, %s16, 3
          %s195 = smul.addr %s194, 4
          %s196 = scalar_lea.vmem %s2, %s195
        $region47: #{psconv_forward.2} parent=15 // pred_fallthru
          _
      $region16: #{psconv_forward.2} parent=5 // pred_fallthru
        _
      %p197 = scmp.le.s32.totalorder 1, %s9
      %p198 = scmp.lt.s32.totalorder %s9, 13
      %p199 = pnand %p197, %p198
      %p200 = pneg %p199
      // Predicated region
      $region48: #{psconv_forward.2} parent=5 // pred_check
        _
      $region49: #{psconv_forward.2} parent=5 // pred_check_branch
        %202 = sbr.rel (%p199) target = $region51
      $region50: #{psconv_forward.2} parent=5 // pred_region
        %s203 = ssub.s32 %s9, 1
        %s204 = sand.u32 %s36, 1
        %s205 = sand.u32 %s36, 1
        %s206 = smul.addr %s205, 32
        %s207 = scalar_lea.vmem [#allocation2], %s206
        // Predicated region
        $region52: #{psconv_forward.2} parent=50 // pred_check
          %p208 = pneg %p49
        $region53: #{psconv_forward.2} parent=50 // pred_check_branch
          %210 = sbr.rel (%p208) target = $region55
        $region54: #{psconv_forward.2} parent=50 // pred_region
          _
        $region55: #{psconv_forward.2} parent=50 // pred_fallthru
          _
        %s211 = sand.u32 %s36, 1
        %s212 = sand.u32 %s36, 1
        %s213 = smul.addr %s212, 32
        %s214 = scalar_lea.vmem [#allocation2], %s213
        %p215 = pneg %p49
        %p216 = pneg %p46
        %p217 = scmp.lt.s32.totalorder %s18, 3
        %s218 = scalar_select %p217, %s18, 3
        %s219 = smul.addr %s218, 4
        %s220 = scalar_lea.vmem %s1, %s219
        %p221 = pneg %p75
        %p222 = pneg %p72
        %p223 = scmp.lt.s32.totalorder %s18, 3
        %s224 = scalar_select %p223, %s18, 3
        %s225 = smul.addr %s224, 4
        %s226 = scalar_lea.vmem %s2, %s225
        %p227 = pneg %p101
        %p228 = pneg %p98
        %p229 = pneg %p129
        %p230 = pneg %p126
        %s231 = smul.u32 2, %s19
        %p232 = scmp.lt.s32.totalorder %s18, 3
        %s233 = scalar_select %p232, %s18, 3
        %p234 = scmp.lt.s32.totalorder %s231, 5
        %s235 = scalar_select %p234, %s231, 5
        %s236 = smul.addr %s233, 6
        %s237 = sadd.s32 %s235, %s236
        %s238 = smul.addr %s237, 4
        %s239 = scalar_lea.vmem %s3, %s238
        %s240 = smul.u32 2, %s19
        %p241 = scmp.lt.s32.totalorder %s18, 3
        %s242 = scalar_select %p241, %s18, 3
        %s243 = smul.addr %s242, 4
        %s244 = scalar_lea.vmem %s1, %s243
        %p245 = scmp.lt.s32.totalorder %s18, 3
        %s246 = scalar_select %p245, %s18, 3
        %s247 = smul.addr %s246, 4
        %s248 = scalar_lea.vmem %s2, %s247
        %s249 = smul.u32 2, %s19
        %p250 = scmp.lt.s32.totalorder %s18, 3
        %s251 = scalar_select %p250, %s18, 3
        %p252 = scmp.lt.s32.totalorder %s249, 5
        %s253 = scalar_select %p252, %s249, 5
        %s254 = smul.addr %s251, 6
        %s255 = sadd.s32 %s253, %s254
        %s256 = smul.addr %s255, 4
        %s257 = scalar_lea.vmem %s3, %s256
        %s258 = smul.u32 2, %s19
        %v259 = vld [vmem:[%s244] sm:$0xf]
        %v260 = vld [vmem:[%s207] sm:$0xff]
        %v261 = vld [vmem:[%s207 + $0x8] sm:$0xff]
        %v262 = vld [vmem:[%s207 + $0x10] sm:$0xf]
        %v263 = vld [vmem:[%s207 + $0x18] sm:$0xf]
        %v264 = vld [vmem:[%s248] sm:$0xf]
        %266 = vset.pattern.permute.xlu0 0
        %267 = vperm.xlu0 %266, %v264
        %v268 = vpop.permute.xlu0 %267
        %vm270 = vcmask 97280
        %v272 = vsel %vm270, %v259, 0
        %vm274 = vcmask 1043456
        %v276 = vsel %vm274, %v262, 0
        %v279 = vsel %vm274, %v263, 0
        %281 = vmatpush.msra.mxu0 0.0
        %282 = vmatpush.msra.mxu0 0.0
        %283 = vmatpush.msra.mxu0 0.0
        %284 = vmatpush.msra.mxu0 0.0
        %285 = vmatpush.msra.mxu0 0.0
        %286 = vmatpush.msra.mxu0 0.0
        %287 = vmatpush.msra.mxu0 0.0
        %288 = vmatpush.msra.mxu0 0.0
        %289 = vmatpush.msra.mxu0 0.0
        %290 = vmatpush.msra.mxu0 0.0
        %291 = vmatpush.msra.mxu0 0.0
        %292 = vmatpush.msra.mxu0 0.0
        %293 = vmatpush.msra.mxu0 0.0
        %294 = vmatpush.msra.mxu0 0.0
        %295 = vmatpush.msra.mxu0 %v276
        %296 = vmatpush.msra.mxu0 %v260
        %297 = vmatmul.f32.gmra.mxu0 %v272
        %v298 = vpop.f32.mrf.mxu0
        %v299 = vadd.f32 %v268, %v298
        %300 = vdwg.mxu0
        %301 = vmatpush.msra.mxu0 0.0
        %302 = vmatpush.msra.mxu0 0.0
        %303 = vmatpush.msra.mxu0 0.0
        %304 = vmatpush.msra.mxu0 0.0
        %305 = vmatpush.msra.mxu0 0.0
        %306 = vmatpush.msra.mxu0 0.0
        %307 = vmatpush.msra.mxu0 0.0
        %308 = vmatpush.msra.mxu0 0.0
        %309 = vmatpush.msra.mxu0 0.0
        %310 = vmatpush.msra.mxu0 0.0
        %311 = vmatpush.msra.mxu0 0.0
        %312 = vmatpush.msra.mxu0 0.0
        %313 = vmatpush.msra.mxu0 0.0
        %314 = vmatpush.msra.mxu0 0.0
        %315 = vmatpush.msra.mxu0 %v279
        %316 = vmatpush.msra.mxu0 %v261
        %317 = vmatmul.f32.gmra.mxu0 %v272
        %v318 = vpop.f32.mrf.mxu0
        %v319 = vadd.f32 %v268, %v318
        %320 = vdwg.mxu0
        %v321 = vxor.u32 %v299, 2147483648
        %v322 = vxor.u32 %v319, 2147483648
        %v323 = vmul.f32 %v321, 1.442695
        %v324 = vpow.pop %v323
        %v325 = vmul.f32 %v322, 1.442695
        %v326 = vpow.pop %v325
        %v327 = vadd.f32 %v324, 1.0
        %v328 = vadd.f32 %v326, 1.0
        %v329 = vrcp.pop %v327
        %v330 = vmul.f32 %v327, %v329
        %v331 = vsub.f32 1.0, %v330
        %v332 = vmul.f32 %v329, %v331
        %v333 = vadd.f32 %v329, %v332
        %vm334 = vweird.f32 %v327
        %vm335 = vweird.f32 %v329
        %vm336 = vmor %vm334, %vm335
        %v337 = vsel %vm336, %v329, %v333
        %v338 = vand.u32 2147483647, %v327
        %vm339 = vcmp.eq.f32.partialorder %v338, 8.507059e+37
        %v340 = vand.u32 %v327, 2147483648
        %v341 = vor.u32 1.1754944e-38, %v340
        %v342 = vsel %vm339, %v341, %v337
        %v343 = vmul.f32 1.0, %v342
        %v344 = vrcp.pop %v328
        %v345 = vmul.f32 %v328, %v344
        %v346 = vsub.f32 1.0, %v345
        %v347 = vmul.f32 %v344, %v346
        %v348 = vadd.f32 %v344, %v347
        %vm349 = vweird.f32 %v328
        %vm350 = vweird.f32 %v344
        %vm351 = vmor %vm349, %vm350
        %v352 = vsel %vm351, %v344, %v348
        %v353 = vand.u32 2147483647, %v328
        %vm354 = vcmp.eq.f32.partialorder %v353, 8.507059e+37
        %v355 = vand.u32 %v328, 2147483648
        %v356 = vor.u32 1.1754944e-38, %v355
        %v357 = vsel %vm354, %v356, %v352
        %v358 = vmul.f32 1.0, %v357
        %v359 = vmul.f32 %v299, %v343
        %v360 = vmul.f32 %v319, %v358
        %v363 = vrot.slane %v360, 4
        %v364 = vsel %vm274, %v359, %v363
        %366 = vst [vmem:[%s257] sm:$0xff] %v364
        %s367 = smul.u32 2, %s19
        %p368 = scmp.lt.s32.totalorder %s18, 3
        %s369 = scalar_select %p368, %s18, 3
        %p370 = scmp.lt.s32.totalorder %s367, 5
        %s371 = scalar_select %p370, %s367, 5
        %s372 = smul.addr %s369, 6
        %s373 = sadd.s32 %s371, %s372
        %s374 = smul.addr %s373, 4
        %s375 = scalar_lea.vmem %s3, %s374
        // Predicated region
        $region56: #{psconv_forward.2} parent=50 // pred_check
          %p376 = pneg %p126
        $region57: #{psconv_forward.2} parent=50 // pred_check_branch
          %378 = sbr.rel (%p376) target = $region59
        $region58: #{psconv_forward.2} parent=50 // pred_region
          %s379 = smul.u32 2, %s19
        $region59: #{psconv_forward.2} parent=50 // pred_fallthru
          _
      $region51: #{psconv_forward.2} parent=5 // pred_fallthru
        _
      %p380 = scmp.le.s32.totalorder 2, %s9
      // Predicated region
      $region60: #{psconv_forward.2} parent=5 // pred_check
        %p381 = pneg %p380
      $region61: #{psconv_forward.2} parent=5 // pred_check_branch
        %383 = sbr.rel (%p381) target = $region63
      $region62: #{psconv_forward.2} parent=5 // pred_region
        %s384 = ssub.s32 %s9, 2
        // Predicated region
        $region64: #{psconv_forward.2} parent=62 // pred_check
          %p385 = pneg %p132
        $region65: #{psconv_forward.2} parent=62 // pred_check_branch
          %387 = sbr.rel (%p385) target = $region67
        $region66: #{psconv_forward.2} parent=62 // pred_region
          %s388 = smul.u32 2, %s21
          %p389 = scmp.lt.s32.totalorder %s20, 3
          %s390 = scalar_select %p389, %s20, 3
          %p391 = scmp.lt.s32.totalorder %s388, 5
          %s392 = scalar_select %p391, %s388, 5
          %s393 = smul.addr %s390, 6
          %s394 = sadd.s32 %s392, %s393
          %s395 = smul.addr %s394, 4
          %s396 = scalar_lea.vmem %s3, %s395
        $region67: #{psconv_forward.2} parent=62 // pred_fallthru
          _
      $region63: #{psconv_forward.2} parent=5 // pred_fallthru
        _
    $region6: #{psconv_forward.2} parent=1 // loop_footer
      %s13 = sadd.s32 1, %s9
    $region7: #{psconv_forward.2} parent=1 // loop_footer_branch
      %8 = sbr.rel target = $region3
    $region8: #{psconv_forward.2} parent=1 // loop_exit
      _

// kernel: squeeze.1
$region0: #{squeeze.1}
  %s0 = inlined_call_operand.vmem [shape: f32[1,16,512], index: 0, kind: input, shape index: {}]
  %s1 = inlined_call_operand.vmem [shape: f32[16,2,16,16], index: 1, kind: output, shape index: {}]
  %v2 = vld [vmem:[%s0] sm:$0xff]
  %vm3 = vcmask 130048
  %4 = vst.msk [vmem:[%s1] sm:$0x1] %vm3, %v2
  %s5 = scalar_lea.vmem %s1, 31
  %6 = vst.msk [vmem:[%s5] sm:$0x2] %vm3, %v2
  %s7 = scalar_lea.vmem %s1, 62
  %8 = vst.msk [vmem:[%s7] sm:$0x4] %vm3, %v2
  %s9 = scalar_lea.vmem %s1, 93
  %10 = vst.msk [vmem:[%s9] sm:$0x8] %vm3, %v2
  %s11 = scalar_lea.vmem %s1, 124
  %12 = vst.msk [vmem:[%s11] sm:$0x10] %vm3, %v2
  %s13 = scalar_lea.vmem %s1, 155
  %14 = vst.msk [vmem:[%s13] sm:$0x20] %vm3, %v2
  %s15 = scalar_lea.vmem %s1, 186
  %16 = vst.msk [vmem:[%s15] sm:$0x40] %vm3, %v2
  %s17 = scalar_lea.vmem %s1, 217
  %18 = vst.msk [vmem:[%s17] sm:$0x80] %vm3, %v2
  %s19 = scalar_lea.vmem %s0, 8
  %v20 = vld [vmem:[%s19] sm:$0xff]
  %vm21 = vcmask 130048
  %s22 = scalar_lea.vmem %s1, 8
  %23 = vst.msk [vmem:[%s22] sm:$0x1] %vm21, %v20
  %s24 = scalar_lea.vmem %s1, 39
  %25 = vst.msk [vmem:[%s24] sm:$0x2] %vm21, %v20
  %s26 = scalar_lea.vmem %s1, 70
  %27 = vst.msk [vmem:[%s26] sm:$0x4] %vm21, %v20
  %s28 = scalar_lea.vmem %s1, 101
  %29 = vst.msk [vmem:[%s28] sm:$0x8] %vm21, %v20
  %s30 = scalar_lea.vmem %s1, 132
  %31 = vst.msk [vmem:[%s30] sm:$0x10] %vm21, %v20
  %s32 = scalar_lea.vmem %s1, 163
  %33 = vst.msk [vmem:[%s32] sm:$0x20] %vm21, %v20
  %s34 = scalar_lea.vmem %s1, 194
  %35 = vst.msk [vmem:[%s34] sm:$0x40] %vm21, %v20
  %s36 = scalar_lea.vmem %s1, 225
  %37 = vst.msk [vmem:[%s36] sm:$0x80] %vm21, %v20
  %s38 = scalar_lea.vmem %s0, 16
  %v39 = vld [vmem:[%s38] sm:$0xff]
  %vm40 = vcmask 130048
  %s41 = scalar_lea.vmem %s1, 16
  %42 = vst.msk [vmem:[%s41] sm:$0x1] %vm40, %v39
  %s43 = scalar_lea.vmem %s1, 47
  %44 = vst.msk [vmem:[%s43] sm:$0x2] %vm40, %v39
  %s45 = scalar_lea.vmem %s1, 78
  %46 = vst.msk [vmem:[%s45] sm:$0x4] %vm40, %v39
  %s47 = scalar_lea.vmem %s1, 109
  %48 = vst.msk [vmem:[%s47] sm:$0x8] %vm40, %v39
  %s49 = scalar_lea.vmem %s1, 140
  %50 = vst.msk [vmem:[%s49] sm:$0x10] %vm40, %v39
  %s51 = scalar_lea.vmem %s1, 171
  %52 = vst.msk [vmem:[%s51] sm:$0x20] %vm40, %v39
  %s53 = scalar_lea.vmem %s1, 202
  %54 = vst.msk [vmem:[%s53] sm:$0x40] %vm40, %v39
  %s55 = scalar_lea.vmem %s1, 233
  %56 = vst.msk [vmem:[%s55] sm:$0x80] %vm40, %v39
  %s57 = scalar_lea.vmem %s0, 24
  %v58 = vld [vmem:[%s57] sm:$0xff]
  %vm59 = vcmask 130048
  %s60 = scalar_lea.vmem %s1, 24
  %61 = vst.msk [vmem:[%s60] sm:$0x1] %vm59, %v58
  %s62 = scalar_lea.vmem %s1, 55
  %63 = vst.msk [vmem:[%s62] sm:$0x2] %vm59, %v58
  %s64 = scalar_lea.vmem %s1, 86
  %65 = vst.msk [vmem:[%s64] sm:$0x4] %vm59, %v58
  %s66 = scalar_lea.vmem %s1, 117
  %67 = vst.msk [vmem:[%s66] sm:$0x8] %vm59, %v58
  %s68 = scalar_lea.vmem %s1, 148
  %69 = vst.msk [vmem:[%s68] sm:$0x10] %vm59, %v58
  %s70 = scalar_lea.vmem %s1, 179
  %71 = vst.msk [vmem:[%s70] sm:$0x20] %vm59, %v58
  %s72 = scalar_lea.vmem %s1, 210
  %73 = vst.msk [vmem:[%s72] sm:$0x40] %vm59, %v58
  %s74 = scalar_lea.vmem %s1, 241
  %75 = vst.msk [vmem:[%s74] sm:$0x80] %vm59, %v58
  %s76 = scalar_lea.vmem %s0, 32
  %v77 = vld [vmem:[%s76] sm:$0xff]
  %vm78 = vcmask 130048
  %s79 = scalar_lea.vmem %s1, 256
  %80 = vst.msk [vmem:[%s79] sm:$0x1] %vm78, %v77
  %s81 = scalar_lea.vmem %s1, 287
  %82 = vst.msk [vmem:[%s81] sm:$0x2] %vm78, %v77
  %s83 = scalar_lea.vmem %s1, 318
  %84 = vst.msk [vmem:[%s83] sm:$0x4] %vm78, %v77
  %s85 = scalar_lea.vmem %s1, 349
  %86 = vst.msk [vmem:[%s85] sm:$0x8] %vm78, %v77
  %s87 = scalar_lea.vmem %s1, 380
  %88 = vst.msk [vmem:[%s87] sm:$0x10] %vm78, %v77
  %s89 = scalar_lea.vmem %s1, 411
  %90 = vst.msk [vmem:[%s89] sm:$0x20] %vm78, %v77
  %s91 = scalar_lea.vmem %s1, 442
  %92 = vst.msk [vmem:[%s91] sm:$0x40] %vm78, %v77
  %s93 = scalar_lea.vmem %s1, 473
  %94 = vst.msk [vmem:[%s93] sm:$0x80] %vm78, %v77
  %s95 = scalar_lea.vmem %s0, 40
  %v96 = vld [vmem:[%s95] sm:$0xff]
  %vm97 = vcmask 130048
  %s98 = scalar_lea.vmem %s1, 264
  %99 = vst.msk [vmem:[%s98] sm:$0x1] %vm97, %v96
  %s100 = scalar_lea.vmem %s1, 295
  %101 = vst.msk [vmem:[%s100] sm:$0x2] %vm97, %v96
  %s102 = scalar_lea.vmem %s1, 326
  %103 = vst.msk [vmem:[%s102] sm:$0x4] %vm97, %v96
  %s104 = scalar_lea.vmem %s1, 357
  %105 = vst.msk [vmem:[%s104] sm:$0x8] %vm97, %v96
  %s106 = scalar_lea.vmem %s1, 388
  %107 = vst.msk [vmem:[%s106] sm:$0x10] %vm97, %v96
  %s108 = scalar_lea.vmem %s1, 419
  %109 = vst.msk [vmem:[%s108] sm:$0x20] %vm97, %v96
  %s110 = scalar_lea.vmem %s1, 450
  %111 = vst.msk [vmem:[%s110] sm:$0x40] %vm97, %v96
  %s112 = scalar_lea.vmem %s1, 481
  %113 = vst.msk [vmem:[%s112] sm:$0x80] %vm97, %v96
  %s114 = scalar_lea.vmem %s0, 48
  %v115 = vld [vmem:[%s114] sm:$0xff]
  %vm116 = vcmask 130048
  %s117 = scalar_lea.vmem %s1, 272
  %118 = vst.msk [vmem:[%s117] sm:$0x1] %vm116, %v115
  %s119 = scalar_lea.vmem %s1, 303
  %120 = vst.msk [vmem:[%s119] sm:$0x2] %vm116, %v115
  %s121 = scalar_lea.vmem %s1, 334
  %122 = vst.msk [vmem:[%s121] sm:$0x4] %vm116, %v115
  %s123 = scalar_lea.vmem %s1, 365
  %124 = vst.msk [vmem:[%s123] sm:$0x8] %vm116, %v115
  %s125 = scalar_lea.vmem %s1, 396
  %126 = vst.msk [vmem:[%s125] sm:$0x10] %vm116, %v115
  %s127 = scalar_lea.vmem %s1, 427
  %128 = vst.msk [vmem:[%s127] sm:$0x20] %vm116, %v115
  %s129 = scalar_lea.vmem %s1, 458
  %130 = vst.msk [vmem:[%s129] sm:$0x40] %vm116, %v115
  %s131 = scalar_lea.vmem %s1, 489
  %132 = vst.msk [vmem:[%s131] sm:$0x80] %vm116, %v115
  %s133 = scalar_lea.vmem %s0, 56
  %v134 = vld [vmem:[%s133] sm:$0xff]
  %vm135 = vcmask 130048
  %s136 = scalar_lea.vmem %s1, 280
  %137 = vst.msk [vmem:[%s136] sm:$0x1] %vm135, %v134
  %s138 = scalar_lea.vmem %s1, 311
  %139 = vst.msk [vmem:[%s138] sm:$0x2] %vm135, %v134
  %s140 = scalar_lea.vmem %s1, 342
  %141 = vst.msk [vmem:[%s140] sm:$0x4] %vm135, %v134
  %s142 = scalar_lea.vmem %s1, 373
  %143 = vst.msk [vmem:[%s142] sm:$0x8] %vm135, %v134
  %s144 = scalar_lea.vmem %s1, 404
  %145 = vst.msk [vmem:[%s144] sm:$0x10] %vm135, %v134
  %s146 = scalar_lea.vmem %s1, 435
  %147 = vst.msk [vmem:[%s146] sm:$0x20] %vm135, %v134
  %s148 = scalar_lea.vmem %s1, 466
  %149 = vst.msk [vmem:[%s148] sm:$0x40] %vm135, %v134
  %s150 = scalar_lea.vmem %s1, 497
  %151 = vst.msk [vmem:[%s150] sm:$0x80] %vm135, %v134
  %v152 = vld [vmem:[%s0] ss:$8 sm:$0xf]
  %s153 = scalar_lea.vmem %s0, 4294967265
  %v154 = vld [vmem:[%s153] ss:$8 sm:$0xf0]
  %vm155 = vcmask 1047556
  %v156 = vsel %vm155, %v154, %v152
  %157 = vrot.lane.b32.xlu0 %v156, 112
  %v158 = vpop.permute.xlu0 %157
  %vm159 = vcmask 130048
  %s160 = scalar_lea.vmem %s1, 1
  %161 = vst.msk [vmem:[%s160] ss:$8 sm:$0xf] %vm159, %v158
  %s162 = scalar_lea.vmem %s1, 1
  %163 = vst.msk [vmem:[%s162] ss:$8 sm:$0xf0] %vm159, %v158
  %s164 = scalar_lea.vmem %s0, 2
  %v165 = vld [vmem:[%s164] ss:$8 sm:$0xf]
  %s166 = scalar_lea.vmem %s0, 4294967267
  %v167 = vld [vmem:[%s166] ss:$8 sm:$0xf0]
  %vm168 = vcmask 1047556
  %v169 = vsel %vm168, %v167, %v165
  %170 = vrot.lane.b32.xlu0 %v169, 112
  %v171 = vpop.permute.xlu0 %170
  %vm172 = vcmask 130048
  %s173 = scalar_lea.vmem %s1, 65
  %174 = vst.msk [vmem:[%s173] ss:$8 sm:$0xf] %vm172, %v171
  %s175 = scalar_lea.vmem %s1, 65
  %176 = vst.msk [vmem:[%s175] ss:$8 sm:$0xf0] %vm172, %v171
  %s177 = scalar_lea.vmem %s0, 4
  %v178 = vld [vmem:[%s177] ss:$8 sm:$0xf]
  %s179 = scalar_lea.vmem %s0, 4294967269
  %v180 = vld [vmem:[%s179] ss:$8 sm:$0xf0]
  %vm181 = vcmask 1047556
  %v182 = vsel %vm181, %v180, %v178
  %183 = vrot.lane.b32.xlu0 %v182, 112
  %v184 = vpop.permute.xlu0 %183
  %vm185 = vcmask 130048
  %s186 = scalar_lea.vmem %s1, 129
  %187 = vst.msk [vmem:[%s186] ss:$8 sm:$0xf] %vm185, %v184
  %s188 = scalar_lea.vmem %s1, 129
  %189 = vst.msk [vmem:[%s188] ss:$8 sm:$0xf0] %vm185, %v184
  %s190 = scalar_lea.vmem %s0, 6
  %v191 = vld [vmem:[%s190] ss:$8 sm:$0xf]
  %s192 = scalar_lea.vmem %s0, 4294967271
  %v193 = vld [vmem:[%s192] ss:$8 sm:$0xf0]
  %vm194 = vcmask 1047556
  %v195 = vsel %vm194, %v193, %v191
  %196 = vrot.lane.b32.xlu0 %v195, 112
  %v197 = vpop.permute.xlu0 %196
  %vm198 = vcmask 130048
  %s199 = scalar_lea.vmem %s1, 193
  %200 = vst.msk [vmem:[%s199] ss:$8 sm:$0xf] %vm198, %v197
  %s201 = scalar_lea.vmem %s1, 193
  %202 = vst.msk [vmem:[%s201] ss:$8 sm:$0xf0] %vm198, %v197
  %s203 = scalar_lea.vmem %s0, 32
  %v204 = vld [vmem:[%s203] ss:$8 sm:$0xf]
  %s205 = scalar_lea.vmem %s0, 1
  %v206 = vld [vmem:[%s205] ss:$8 sm:$0xf0]
  %vm207 = vcmask 1047556
  %v208 = vsel %vm207, %v206, %v204
  %209 = vrot.lane.b32.xlu0 %v208, 112
  %v210 = vpop.permute.xlu0 %209
  %vm211 = vcmask 130048
  %s212 = scalar_lea.vmem %s1, 257
  %213 = vst.msk [vmem:[%s212] ss:$8 sm:$0xf] %vm211, %v210
  %s214 = scalar_lea.vmem %s1, 257
  %215 = vst.msk [vmem:[%s214] ss:$8 sm:$0xf0] %vm211, %v210
  %s216 = scalar_lea.vmem %s0, 34
  %v217 = vld [vmem:[%s216] ss:$8 sm:$0xf]
  %s218 = scalar_lea.vmem %s0, 3
  %v219 = vld [vmem:[%s218] ss:$8 sm:$0xf0]
  %vm220 = vcmask 1047556
  %v221 = vsel %vm220, %v219, %v217
  %222 = vrot.lane.b32.xlu0 %v221, 112
  %v223 = vpop.permute.xlu0 %222
  %vm224 = vcmask 130048
  %s225 = scalar_lea.vmem %s1, 321
  %226 = vst.msk [vmem:[%s225] ss:$8 sm:$0xf] %vm224, %v223
  %s227 = scalar_lea.vmem %s1, 321
  %228 = vst.msk [vmem:[%s227] ss:$8 sm:$0xf0] %vm224, %v223
  %s229 = scalar_lea.vmem %s0, 36
  %v230 = vld [vmem:[%s229] ss:$8 sm:$0xf]
  %s231 = scalar_lea.vmem %s0, 5
  %v232 = vld [vmem:[%s231] ss:$8 sm:$0xf0]
  %vm233 = vcmask 1047556
  %v234 = vsel %vm233, %v232, %v230
  %235 = vrot.lane.b32.xlu0 %v234, 112
  %v236 = vpop.permute.xlu0 %235
  %vm237 = vcmask 130048
  %s238 = scalar_lea.vmem %s1, 385
  %239 = vst.msk [vmem:[%s238] ss:$8 sm:$0xf] %vm237, %v236
  %s240 = scalar_lea.vmem %s1, 385
  %241 = vst.msk [vmem:[%s240] ss:$8 sm:$0xf0] %vm237, %v236
  %s242 = scalar_lea.vmem %s0, 38
  %v243 = vld [vmem:[%s242] ss:$8 sm:$0xf]
  %s244 = scalar_lea.vmem %s0, 7
  %v245 = vld [vmem:[%s244] ss:$8 sm:$0xf0]
  %vm246 = vcmask 1047556
  %v247 = vsel %vm246, %v245, %v243
  %248 = vrot.lane.b32.xlu0 %v247, 112
  %v249 = vpop.permute.xlu0 %248
  %vm250 = vcmask 130048
  %s251 = scalar_lea.vmem %s1, 449
  %252 = vst.msk [vmem:[%s251] ss:$8 sm:$0xf] %vm250, %v249
  %s253 = scalar_lea.vmem %s1, 449
  %254 = vst.msk [vmem:[%s253] ss:$8 sm:$0xf0] %vm250, %v249
  %v255 = vld [vmem:[%s0] ss:$8 sm:$0xf]
  %s256 = scalar_lea.vmem %s0, 4294967265
  %v257 = vld [vmem:[%s256] ss:$8 sm:$0xf0]
  %vm258 = vcmask 1047556
  %v259 = vsel %vm258, %v257, %v255
  %260 = vrot.lane.b32.xlu0 %v259, 96
  %v261 = vpop.permute.xlu0 %260
  %vm262 = vcmask 130048
  %s263 = scalar_lea.vmem %s1, 2
  %264 = vst.msk [vmem:[%s263] ss:$8 sm:$0xf] %vm262, %v261
  %s265 = scalar_lea.vmem %s1, 2
  %266 = vst.msk [vmem:[%s265] ss:$8 sm:$0xf0] %vm262, %v261
  %s267 = scalar_lea.vmem %s0, 2
  %v268 = vld [vmem:[%s267] ss:$8 sm:$0xf]
  %s269 = scalar_lea.vmem %s0, 4294967267
  %v270 = vld [vmem:[%s269] ss:$8 sm:$0xf0]
  %vm271 = vcmask 1047556
  %v272 = vsel %vm271, %v270, %v268
  %273 = vrot.lane.b32.xlu0 %v272, 96
  %v274 = vpop.permute.xlu0 %273
  %vm275 = vcmask 130048
  %s276 = scalar_lea.vmem %s1, 66
  %277 = vst.msk [vmem:[%s276] ss:$8 sm:$0xf] %vm275, %v274
  %s278 = scalar_lea.vmem %s1, 66
  %279 = vst.msk [vmem:[%s278] ss:$8 sm:$0xf0] %vm275, %v274
  %s280 = scalar_lea.vmem %s0, 4
  %v281 = vld [vmem:[%s280] ss:$8 sm:$0xf]
  %s282 = scalar_lea.vmem %s0, 4294967269
  %v283 = vld [vmem:[%s282] ss:$8 sm:$0xf0]
  %vm284 = vcmask 1047556
  %v285 = vsel %vm284, %v283, %v281
  %286 = vrot.lane.b32.xlu0 %v285, 96
  %v287 = vpop.permute.xlu0 %286
  %vm288 = vcmask 130048
  %s289 = scalar_lea.vmem %s1, 130
  %290 = vst.msk [vmem:[%s289] ss:$8 sm:$0xf] %vm288, %v287
  %s291 = scalar_lea.vmem %s1, 130
  %292 = vst.msk [vmem:[%s291] ss:$8 sm:$0xf0] %vm288, %v287
  %s293 = scalar_lea.vmem %s0, 6
  %v294 = vld [vmem:[%s293] ss:$8 sm:$0xf]
  %s295 = scalar_lea.vmem %s0, 4294967271
  %v296 = vld [vmem:[%s295] ss:$8 sm:$0xf0]
  %vm297 = vcmask 1047556
  %v298 = vsel %vm297, %v296, %v294
  %299 = vrot.lane.b32.xlu0 %v298, 96
  %v300 = vpop.permute.xlu0 %299
  %vm301 = vcmask 130048
  %s302 = scalar_lea.vmem %s1, 194
  %303 = vst.msk [vmem:[%s302] ss:$8 sm:$0xf] %vm301, %v300
  %s304 = scalar_lea.vmem %s1, 194
  %305 = vst.msk [vmem:[%s304] ss:$8 sm:$0xf0] %vm301, %v300
  %s306 = scalar_lea.vmem %s0, 32
  %v307 = vld [vmem:[%s306] ss:$8 sm:$0xf]
  %s308 = scalar_lea.vmem %s0, 1
  %v309 = vld [vmem:[%s308] ss:$8 sm:$0xf0]
  %vm310 = vcmask 1047556
  %v311 = vsel %vm310, %v309, %v307
  %312 = vrot.lane.b32.xlu0 %v311, 96
  %v313 = vpop.permute.xlu0 %312
  %vm314 = vcmask 130048
  %s315 = scalar_lea.vmem %s1, 258
  %316 = vst.msk [vmem:[%s315] ss:$8 sm:$0xf] %vm314, %v313
  %s317 = scalar_lea.vmem %s1, 258
  %318 = vst.msk [vmem:[%s317] ss:$8 sm:$0xf0] %vm314, %v313
  %s319 = scalar_lea.vmem %s0, 34
  %v320 = vld [vmem:[%s319] ss:$8 sm:$0xf]
  %s321 = scalar_lea.vmem %s0, 3
  %v322 = vld [vmem:[%s321] ss:$8 sm:$0xf0]
  %vm323 = vcmask 1047556
  %v324 = vsel %vm323, %v322, %v320
  %325 = vrot.lane.b32.xlu0 %v324, 96
  %v326 = vpop.permute.xlu0 %325
  %vm327 = vcmask 130048
  %s328 = scalar_lea.vmem %s1, 322
  %329 = vst.msk [vmem:[%s328] ss:$8 sm:$0xf] %vm327, %v326
  %s330 = scalar_lea.vmem %s1, 322
  %331 = vst.msk [vmem:[%s330] ss:$8 sm:$0xf0] %vm327, %v326
  %s332 = scalar_lea.vmem %s0, 36
  %v333 = vld [vmem:[%s332] ss:$8 sm:$0xf]
  %s334 = scalar_lea.vmem %s0, 5
  %v335 = vld [vmem:[%s334] ss:$8 sm:$0xf0]
  %vm336 = vcmask 1047556
  %v337 = vsel %vm336, %v335, %v333
  %338 = vrot.lane.b32.xlu0 %v337, 96
  %v339 = vpop.permute.xlu0 %338
  %vm340 = vcmask 130048
  %s341 = scalar_lea.vmem %s1, 386
  %342 = vst.msk [vmem:[%s341] ss:$8 sm:$0xf] %vm340, %v339
  %s343 = scalar_lea.vmem %s1, 386
  %344 = vst.msk [vmem:[%s343] ss:$8 sm:$0xf0] %vm340, %v339
  %s345 = scalar_lea.vmem %s0, 38
  %v346 = vld [vmem:[%s345] ss:$8 sm:$0xf]
  %s347 = scalar_lea.vmem %s0, 7
  %v348 = vld [vmem:[%s347] ss:$8 sm:$0xf0]
  %vm349 = vcmask 1047556
  %v350 = vsel %vm349, %v348, %v346
  %351 = vrot.lane.b32.xlu0 %v350, 96
  %v352 = vpop.permute.xlu0 %351
  %vm353 = vcmask 130048
  %s354 = scalar_lea.vmem %s1, 450
  %355 = vst.msk [vmem:[%s354] ss:$8 sm:$0xf] %vm353, %v352
  %s356 = scalar_lea.vmem %s1, 450
  %357 = vst.msk [vmem:[%s356] ss:$8 sm:$0xf0] %vm353, %v352
  %v358 = vld [vmem:[%s0] ss:$8 sm:$0xf]
  %s359 = scalar_lea.vmem %s0, 4294967265
  %v360 = vld [vmem:[%s359] ss:$8 sm:$0xf0]
  %vm361 = vcmask 1047556
  %v362 = vsel %vm361, %v360, %v358
  %363 = vrot.lane.b32.xlu0 %v362, 80
  %v364 = vpop.permute.xlu0 %363
  %vm365 = vcmask 130048
  %s366 = scalar_lea.vmem %s1, 3
  %367 = vst.msk [vmem:[%s366] ss:$8 sm:$0xf] %vm365, %v364
  %s368 = scalar_lea.vmem %s1, 3
  %369 = vst.msk [vmem:[%s368] ss:$8 sm:$0xf0] %vm365, %v364
  %s370 = scalar_lea.vmem %s0, 2
  %v371 = vld [vmem:[%s370] ss:$8 sm:$0xf]
  %s372 = scalar_lea.vmem %s0, 4294967267
  %v373 = vld [vmem:[%s372] ss:$8 sm:$0xf0]
  %vm374 = vcmask 1047556
  %v375 = vsel %vm374, %v373, %v371
  %376 = vrot.lane.b32.xlu0 %v375, 80
  %v377 = vpop.permute.xlu0 %376
  %vm378 = vcmask 130048
  %s379 = scalar_lea.vmem %s1, 67
  %380 = vst.msk [vmem:[%s379] ss:$8 sm:$0xf] %vm378, %v377
  %s381 = scalar_lea.vmem %s1, 67
  %382 = vst.msk [vmem:[%s381] ss:$8 sm:$0xf0] %vm378, %v377
  %s383 = scalar_lea.vmem %s0, 4
  %v384 = vld [vmem:[%s383] ss:$8 sm:$0xf]
  %s385 = scalar_lea.vmem %s0, 4294967269
  %v386 = vld [vmem:[%s385] ss:$8 sm:$0xf0]
  %vm387 = vcmask 1047556
  %v388 = vsel %vm387, %v386, %v384
  %389 = vrot.lane.b32.xlu0 %v388, 80
  %v390 = vpop.permute.xlu0 %389
  %vm391 = vcmask 130048
  %s392 = scalar_lea.vmem %s1, 131
  %393 = vst.msk [vmem:[%s392] ss:$8 sm:$0xf] %vm391, %v390
  %s394 = scalar_lea.vmem %s1, 131
  %395 = vst.msk [vmem:[%s394] ss:$8 sm:$0xf0] %vm391, %v390
  %s396 = scalar_lea.vmem %s0, 6
  %v397 = vld [vmem:[%s396] ss:$8 sm:$0xf]
  %s398 = scalar_lea.vmem %s0, 4294967271
  %v399 = vld [vmem:[%s398] ss:$8 sm:$0xf0]
  %vm400 = vcmask 1047556
  %v401 = vsel %vm400, %v399, %v397
  %402 = vrot.lane.b32.xlu0 %v401, 80
  %v403 = vpop.permute.xlu0 %402
  %vm404 = vcmask 130048
  %s405 = scalar_lea.vmem %s1, 195
  %406 = vst.msk [vmem:[%s405] ss:$8 sm:$0xf] %vm404, %v403
  %s407 = scalar_lea.vmem %s1, 195
  %408 = vst.msk [vmem:[%s407] ss:$8 sm:$0xf0] %vm404, %v403
  %s409 = scalar_lea.vmem %s0, 32
  %v410 = vld [vmem:[%s409] ss:$8 sm:$0xf]
  %s411 = scalar_lea.vmem %s0, 1
  %v412 = vld [vmem:[%s411] ss:$8 sm:$0xf0]
  %vm413 = vcmask 1047556
  %v414 = vsel %vm413, %v412, %v410
  %415 = vrot.lane.b32.xlu0 %v414, 80
  %v416 = vpop.permute.xlu0 %415
  %vm417 = vcmask 130048
  %s418 = scalar_lea.vmem %s1, 259
  %419 = vst.msk [vmem:[%s418] ss:$8 sm:$0xf] %vm417, %v416
  %s420 = scalar_lea.vmem %s1, 259
  %421 = vst.msk [vmem:[%s420] ss:$8 sm:$0xf0] %vm417, %v416
  %s422 = scalar_lea.vmem %s0, 34
  %v423 = vld [vmem:[%s422] ss:$8 sm:$0xf]
  %s424 = scalar_lea.vmem %s0, 3
  %v425 = vld [vmem:[%s424] ss:$8 sm:$0xf0]
  %vm426 = vcmask 1047556
  %v427 = vsel %vm426, %v425, %v423
  %428 = vrot.lane.b32.xlu0 %v427, 80
  %v429 = vpop.permute.xlu0 %428
  %vm430 = vcmask 130048
  %s431 = scalar_lea.vmem %s1, 323
  %432 = vst.msk [vmem:[%s431] ss:$8 sm:$0xf] %vm430, %v429
  %s433 = scalar_lea.vmem %s1, 323
  %434 = vst.msk [vmem:[%s433] ss:$8 sm:$0xf0] %vm430, %v429
  %s435 = scalar_lea.vmem %s0, 36
  %v436 = vld [vmem:[%s435] ss:$8 sm:$0xf]
  %s437 = scalar_lea.vmem %s0, 5
  %v438 = vld [vmem:[%s437] ss:$8 sm:$0xf0]
  %vm439 = vcmask 1047556
  %v440 = vsel %vm439, %v438, %v436
  %441 = vrot.lane.b32.xlu0 %v440, 80
  %v442 = vpop.permute.xlu0 %441
  %vm443 = vcmask 130048
  %s444 = scalar_lea.vmem %s1, 387
  %445 = vst.msk [vmem:[%s444] ss:$8 sm:$0xf] %vm443, %v442
  %s446 = scalar_lea.vmem %s1, 387
  %447 = vst.msk [vmem:[%s446] ss:$8 sm:$0xf0] %vm443, %v442
  %s448 = scalar_lea.vmem %s0, 38
  %v449 = vld [vmem:[%s448] ss:$8 sm:$0xf]
  %s450 = scalar_lea.vmem %s0, 7
  %v451 = vld [vmem:[%s450] ss:$8 sm:$0xf0]
  %vm452 = vcmask 1047556
  %v453 = vsel %vm452, %v451, %v449
  %454 = vrot.lane.b32.xlu0 %v453, 80
  %v455 = vpop.permute.xlu0 %454
  %vm456 = vcmask 130048
  %s457 = scalar_lea.vmem %s1, 451
  %458 = vst.msk [vmem:[%s457] ss:$8 sm:$0xf] %vm456, %v455
  %s459 = scalar_lea.vmem %s1, 451
  %460 = vst.msk [vmem:[%s459] ss:$8 sm:$0xf0] %vm456, %v455
  %v461 = vld [vmem:[%s0] ss:$8 sm:$0xf]
  %s462 = scalar_lea.vmem %s0, 4294967265
  %v463 = vld [vmem:[%s462] ss:$8 sm:$0xf0]
  %vm464 = vcmask 1047556
  %v465 = vsel %vm464, %v463, %v461
  %466 = vrot.lane.b32.xlu0 %v465, 64
  %v467 = vpop.permute.xlu0 %466
  %vm468 = vcmask 130048
  %s469 = scalar_lea.vmem %s1, 4
  %470 = vst.msk [vmem:[%s469] ss:$8 sm:$0xf] %vm468, %v467
  %s471 = scalar_lea.vmem %s1, 4
  %472 = vst.msk [vmem:[%s471] ss:$8 sm:$0xf0] %vm468, %v467
  %s473 = scalar_lea.vmem %s0, 2
  %v474 = vld [vmem:[%s473] ss:$8 sm:$0xf]
  %s475 = scalar_lea.vmem %s0, 4294967267
  %v476 = vld [vmem:[%s475] ss:$8 sm:$0xf0]
  %vm477 = vcmask 1047556
  %v478 = vsel %vm477, %v476, %v474
  %479 = vrot.lane.b32.xlu0 %v478, 64
  %v480 = vpop.permute.xlu0 %479
  %vm481 = vcmask 130048
  %s482 = scalar_lea.vmem %s1, 68
  %483 = vst.msk [vmem:[%s482] ss:$8 sm:$0xf] %vm481, %v480
  %s484 = scalar_lea.vmem %s1, 68
  %485 = vst.msk [vmem:[%s484] ss:$8 sm:$0xf0] %vm481, %v480
  %s486 = scalar_lea.vmem %s0, 4
  %v487 = vld [vmem:[%s486] ss:$8 sm:$0xf]
  %s488 = scalar_lea.vmem %s0, 4294967269
  %v489 = vld [vmem:[%s488] ss:$8 sm:$0xf0]
  %vm490 = vcmask 1047556
  %v491 = vsel %vm490, %v489, %v487
  %492 = vrot.lane.b32.xlu0 %v491, 64
  %v493 = vpop.permute.xlu0 %492
  %vm494 = vcmask 130048
  %s495 = scalar_lea.vmem %s1, 132
  %496 = vst.msk [vmem:[%s495] ss:$8 sm:$0xf] %vm494, %v493
  %s497 = scalar_lea.vmem %s1, 132
  %498 = vst.msk [vmem:[%s497] ss:$8 sm:$0xf0] %vm494, %v493
  %s499 = scalar_lea.vmem %s0, 6
  %v500 = vld [vmem:[%s499] ss:$8 sm:$0xf]
  %s501 = scalar_lea.vmem %s0, 4294967271
  %v502 = vld [vmem:[%s501] ss:$8 sm:$0xf0]
  %vm503 = vcmask 1047556
  %v504 = vsel %vm503, %v502, %v500
  %505 = vrot.lane.b32.xlu0 %v504, 64
  %v506 = vpop.permute.xlu0 %505
  %vm507 = vcmask 130048
  %s508 = scalar_lea.vmem %s1, 196
  %509 = vst.msk [vmem:[%s508] ss:$8 sm:$0xf] %vm507, %v506
  %s510 = scalar_lea.vmem %s1, 196
  %511 = vst.msk [vmem:[%s510] ss:$8 sm:$0xf0] %vm507, %v506
  %s512 = scalar_lea.vmem %s0, 32
  %v513 = vld [vmem:[%s512] ss:$8 sm:$0xf]
  %s514 = scalar_lea.vmem %s0, 1
  %v515 = vld [vmem:[%s514] ss:$8 sm:$0xf0]
  %vm516 = vcmask 1047556
  %v517 = vsel %vm516, %v515, %v513
  %518 = vrot.lane.b32.xlu0 %v517, 64
  %v519 = vpop.permute.xlu0 %518
  %vm520 = vcmask 130048
  %s521 = scalar_lea.vmem %s1, 260
  %522 = vst.msk [vmem:[%s521] ss:$8 sm:$0xf] %vm520, %v519
  %s523 = scalar_lea.vmem %s1, 260
  %524 = vst.msk [vmem:[%s523] ss:$8 sm:$0xf0] %vm520, %v519
  %s525 = scalar_lea.vmem %s0, 34
  %v526 = vld [vmem:[%s525] ss:$8 sm:$0xf]
  %s527 = scalar_lea.vmem %s0, 3
  %v528 = vld [vmem:[%s527] ss:$8 sm:$0xf0]
  %vm529 = vcmask 1047556
  %v530 = vsel %vm529, %v528, %v526
  %531 = vrot.lane.b32.xlu0 %v530, 64
  %v532 = vpop.permute.xlu0 %531
  %vm533 = vcmask 130048
  %s534 = scalar_lea.vmem %s1, 324
  %535 = vst.msk [vmem:[%s534] ss:$8 sm:$0xf] %vm533, %v532
  %s536 = scalar_lea.vmem %s1, 324
  %537 = vst.msk [vmem:[%s536] ss:$8 sm:$0xf0] %vm533, %v532
  %s538 = scalar_lea.vmem %s0, 36
  %v539 = vld [vmem:[%s538] ss:$8 sm:$0xf]
  %s540 = scalar_lea.vmem %s0, 5
  %v541 = vld [vmem:[%s540] ss:$8 sm:$0xf0]
  %vm542 = vcmask 1047556
  %v543 = vsel %vm542, %v541, %v539
  %544 = vrot.lane.b32.xlu0 %v543, 64
  %v545 = vpop.permute.xlu0 %544
  %vm546 = vcmask 130048
  %s547 = scalar_lea.vmem %s1, 388
  %548 = vst.msk [vmem:[%s547] ss:$8 sm:$0xf] %vm546, %v545
  %s549 = scalar_lea.vmem %s1, 388
  %550 = vst.msk [vmem:[%s549] ss:$8 sm:$0xf0] %vm546, %v545
  %s551 = scalar_lea.vmem %s0, 38
  %v552 = vld [vmem:[%s551] ss:$8 sm:$0xf]
  %s553 = scalar_lea.vmem %s0, 7
  %v554 = vld [vmem:[%s553] ss:$8 sm:$0xf0]
  %vm555 = vcmask 1047556
  %v556 = vsel %vm555, %v554, %v552
  %557 = vrot.lane.b32.xlu0 %v556, 64
  %v558 = vpop.permute.xlu0 %557
  %vm559 = vcmask 130048
  %s560 = scalar_lea.vmem %s1, 452
  %561 = vst.msk [vmem:[%s560] ss:$8 sm:$0xf] %vm559, %v558
  %s562 = scalar_lea.vmem %s1, 452
  %563 = vst.msk [vmem:[%s562] ss:$8 sm:$0xf0] %vm559, %v558
  %v564 = vld [vmem:[%s0] ss:$8 sm:$0xf]
  %s565 = scalar_lea.vmem %s0, 4294967265
  %v566 = vld [vmem:[%s565] ss:$8 sm:$0xf0]
  %vm567 = vcmask 1047556
  %v568 = vsel %vm567, %v566, %v564
  %569 = vrot.lane.b32.xlu0 %v568, 48
  %v570 = vpop.permute.xlu0 %569
  %vm571 = vcmask 130048
  %s572 = scalar_lea.vmem %s1, 5
  %573 = vst.msk [vmem:[%s572] ss:$8 sm:$0xf] %vm571, %v570
  %s574 = scalar_lea.vmem %s1, 5
  %575 = vst.msk [vmem:[%s574] ss:$8 sm:$0xf0] %vm571, %v570
  %s576 = scalar_lea.vmem %s0, 2
  %v577 = vld [vmem:[%s576] ss:$8 sm:$0xf]
  %s578 = scalar_lea.vmem %s0, 4294967267
  %v579 = vld [vmem:[%s578] ss:$8 sm:$0xf0]
  %vm580 = vcmask 1047556
  %v581 = vsel %vm580, %v579, %v577
  %582 = vrot.lane.b32.xlu0 %v581, 48
  %v583 = vpop.permute.xlu0 %582
  %vm584 = vcmask 130048
  %s585 = scalar_lea.vmem %s1, 69
  %586 = vst.msk [vmem:[%s585] ss:$8 sm:$0xf] %vm584, %v583
  %s587 = scalar_lea.vmem %s1, 69
  %588 = vst.msk [vmem:[%s587] ss:$8 sm:$0xf0] %vm584, %v583
  %s589 = scalar_lea.vmem %s0, 4
  %v590 = vld [vmem:[%s589] ss:$8 sm:$0xf]
  %s591 = scalar_lea.vmem %s0, 4294967269
  %v592 = vld [vmem:[%s591] ss:$8 sm:$0xf0]
  %vm593 = vcmask 1047556
  %v594 = vsel %vm593, %v592, %v590
  %595 = vrot.lane.b32.xlu0 %v594, 48
  %v596 = vpop.permute.xlu0 %595
  %vm597 = vcmask 130048
  %s598 = scalar_lea.vmem %s1, 133
  %599 = vst.msk [vmem:[%s598] ss:$8 sm:$0xf] %vm597, %v596
  %s600 = scalar_lea.vmem %s1, 133
  %601 = vst.msk [vmem:[%s600] ss:$8 sm:$0xf0] %vm597, %v596
  %s602 = scalar_lea.vmem %s0, 6
  %v603 = vld [vmem:[%s602] ss:$8 sm:$0xf]
  %s604 = scalar_lea.vmem %s0, 4294967271
  %v605 = vld [vmem:[%s604] ss:$8 sm:$0xf0]
  %vm606 = vcmask 1047556
  %v607 = vsel %vm606, %v605, %v603
  %608 = vrot.lane.b32.xlu0 %v607, 48
  %v609 = vpop.permute.xlu0 %608
  %vm610 = vcmask 130048
  %s611 = scalar_lea.vmem %s1, 197
  %612 = vst.msk [vmem:[%s611] ss:$8 sm:$0xf] %vm610, %v609
  %s613 = scalar_lea.vmem %s1, 197
  %614 = vst.msk [vmem:[%s613] ss:$8 sm:$0xf0] %vm610, %v609
  %s615 = scalar_lea.vmem %s0, 32
  %v616 = vld [vmem:[%s615] ss:$8 sm:$0xf]
  %s617 = scalar_lea.vmem %s0, 1
  %v618 = vld [vmem:[%s617] ss:$8 sm:$0xf0]
  %vm619 = vcmask 1047556
  %v620 = vsel %vm619, %v618, %v616
  %621 = vrot.lane.b32.xlu0 %v620, 48
  %v622 = vpop.permute.xlu0 %621
  %vm623 = vcmask 130048
  %s624 = scalar_lea.vmem %s1, 261
  %625 = vst.msk [vmem:[%s624] ss:$8 sm:$0xf] %vm623, %v622
  %s626 = scalar_lea.vmem %s1, 261
  %627 = vst.msk [vmem:[%s626] ss:$8 sm:$0xf0] %vm623, %v622
  %s628 = scalar_lea.vmem %s0, 34
  %v629 = vld [vmem:[%s628] ss:$8 sm:$0xf]
  %s630 = scalar_lea.vmem %s0, 3
  %v631 = vld [vmem:[%s630] ss:$8 sm:$0xf0]
  %vm632 = vcmask 1047556
  %v633 = vsel %vm632, %v631, %v629
  %634 = vrot.lane.b32.xlu0 %v633, 48
  %v635 = vpop.permute.xlu0 %634
  %vm636 = vcmask 130048
  %s637 = scalar_lea.vmem %s1, 325
  %638 = vst.msk [vmem:[%s637] ss:$8 sm:$0xf] %vm636, %v635
  %s639 = scalar_lea.vmem %s1, 325
  %640 = vst.msk [vmem:[%s639] ss:$8 sm:$0xf0] %vm636, %v635
  %s641 = scalar_lea.vmem %s0, 36
  %v642 = vld [vmem:[%s641] ss:$8 sm:$0xf]
  %s643 = scalar_lea.vmem %s0, 5
  %v644 = vld [vmem:[%s643] ss:$8 sm:$0xf0]
  %vm645 = vcmask 1047556
  %v646 = vsel %vm645, %v644, %v642
  %647 = vrot.lane.b32.xlu0 %v646, 48
  %v648 = vpop.permute.xlu0 %647
  %vm649 = vcmask 130048
  %s650 = scalar_lea.vmem %s1, 389
  %651 = vst.msk [vmem:[%s650] ss:$8 sm:$0xf] %vm649, %v648
  %s652 = scalar_lea.vmem %s1, 389
  %653 = vst.msk [vmem:[%s652] ss:$8 sm:$0xf0] %vm649, %v648
  %s654 = scalar_lea.vmem %s0, 38
  %v655 = vld [vmem:[%s654] ss:$8 sm:$0xf]
  %s656 = scalar_lea.vmem %s0, 7
  %v657 = vld [vmem:[%s656] ss:$8 sm:$0xf0]
  %vm658 = vcmask 1047556
  %v659 = vsel %vm658, %v657, %v655
  %660 = vrot.lane.b32.xlu0 %v659, 48
  %v661 = vpop.permute.xlu0 %660
  %vm662 = vcmask 130048
  %s663 = scalar_lea.vmem %s1, 453
  %664 = vst.msk [vmem:[%s663] ss:$8 sm:$0xf] %vm662, %v661
  %s665 = scalar_lea.vmem %s1, 453
  %666 = vst.msk [vmem:[%s665] ss:$8 sm:$0xf0] %vm662, %v661
  %v667 = vld [vmem:[%s0] ss:$8 sm:$0xf]
  %s668 = scalar_lea.vmem %s0, 4294967265
  %v669 = vld [vmem:[%s668] ss:$8 sm:$0xf0]
  %vm670 = vcmask 1047556
  %v671 = vsel %vm670, %v669, %v667
  %672 = vrot.lane.b32.xlu0 %v671, 32
  %v673 = vpop.permute.xlu0 %672
  %vm674 = vcmask 130048
  %s675 = scalar_lea.vmem %s1, 6
  %676 = vst.msk [vmem:[%s675] ss:$8 sm:$0xf] %vm674, %v673
  %s677 = scalar_lea.vmem %s1, 6
  %678 = vst.msk [vmem:[%s677] ss:$8 sm:$0xf0] %vm674, %v673
  %s679 = scalar_lea.vmem %s0, 2
  %v680 = vld [vmem:[%s679] ss:$8 sm:$0xf]
  %s681 = scalar_lea.vmem %s0, 4294967267
  %v682 = vld [vmem:[%s681] ss:$8 sm:$0xf0]
  %vm683 = vcmask 1047556
  %v684 = vsel %vm683, %v682, %v680
  %685 = vrot.lane.b32.xlu0 %v684, 32
  %v686 = vpop.permute.xlu0 %685
  %vm687 = vcmask 130048
  %s688 = scalar_lea.vmem %s1, 70
  %689 = vst.msk [vmem:[%s688] ss:$8 sm:$0xf] %vm687, %v686
  %s690 = scalar_lea.vmem %s1, 70
  %691 = vst.msk [vmem:[%s690] ss:$8 sm:$0xf0] %vm687, %v686
  %s692 = scalar_lea.vmem %s0, 4
  %v693 = vld [vmem:[%s692] ss:$8 sm:$0xf]
  %s694 = scalar_lea.vmem %s0, 4294967269
  %v695 = vld [vmem:[%s694] ss:$8 sm:$0xf0]
  %vm696 = vcmask 1047556
  %v697 = vsel %vm696, %v695, %v693
  %698 = vrot.lane.b32.xlu0 %v697, 32
  %v699 = vpop.permute.xlu0 %698
  %vm700 = vcmask 130048
  %s701 = scalar_lea.vmem %s1, 134
  %702 = vst.msk [vmem:[%s701] ss:$8 sm:$0xf] %vm700, %v699
  %s703 = scalar_lea.vmem %s1, 134
  %704 = vst.msk [vmem:[%s703] ss:$8 sm:$0xf0] %vm700, %v699
  %s705 = scalar_lea.vmem %s0, 6
  %v706 = vld [vmem:[%s705] ss:$8 sm:$0xf]
  %s707 = scalar_lea.vmem %s0, 4294967271
  %v708 = vld [vmem:[%s707] ss:$8 sm:$0xf0]
  %vm709 = vcmask 1047556
  %v710 = vsel %vm709, %v708, %v706
  %711 = vrot.lane.b32.xlu0 %v710, 32
  %v712 = vpop.permute.xlu0 %711
  %vm713 = vcmask 130048
  %s714 = scalar_lea.vmem %s1, 198
  %715 = vst.msk [vmem:[%s714] ss:$8 sm:$0xf] %vm713, %v712
  %s716 = scalar_lea.vmem %s1, 198
  %717 = vst.msk [vmem:[%s716] ss:$8 sm:$0xf0] %vm713, %v712
  %s718 = scalar_lea.vmem %s0, 32
  %v719 = vld [vmem:[%s718] ss:$8 sm:$0xf]
  %s720 = scalar_lea.vmem %s0, 1
  %v721 = vld [vmem:[%s720] ss:$8 sm:$0xf0]
  %vm722 = vcmask 1047556
  %v723 = vsel %vm722, %v721, %v719
  %724 = vrot.lane.b32.xlu0 %v723, 32
  %v725 = vpop.permute.xlu0 %724
  %vm726 = vcmask 130048
  %s727 = scalar_lea.vmem %s1, 262
  %728 = vst.msk [vmem:[%s727] ss:$8 sm:$0xf] %vm726, %v725
  %s729 = scalar_lea.vmem %s1, 262
  %730 = vst.msk [vmem:[%s729] ss:$8 sm:$0xf0] %vm726, %v725
  %s731 = scalar_lea.vmem %s0, 34
  %v732 = vld [vmem:[%s731] ss:$8 sm:$0xf]
  %s733 = scalar_lea.vmem %s0, 3
  %v734 = vld [vmem:[%s733] ss:$8 sm:$0xf0]
  %vm735 = vcmask 1047556
  %v736 = vsel %vm735, %v734, %v732
  %737 = vrot.lane.b32.xlu0 %v736, 32
  %v738 = vpop.permute.xlu0 %737
  %vm739 = vcmask 130048
  %s740 = scalar_lea.vmem %s1, 326
  %741 = vst.msk [vmem:[%s740] ss:$8 sm:$0xf] %vm739, %v738
  %s742 = scalar_lea.vmem %s1, 326
  %743 = vst.msk [vmem:[%s742] ss:$8 sm:$0xf0] %vm739, %v738
  %s744 = scalar_lea.vmem %s0, 36
  %v745 = vld [vmem:[%s744] ss:$8 sm:$0xf]
  %s746 = scalar_lea.vmem %s0, 5
  %v747 = vld [vmem:[%s746] ss:$8 sm:$0xf0]
  %vm748 = vcmask 1047556
  %v749 = vsel %vm748, %v747, %v745
  %750 = vrot.lane.b32.xlu0 %v749, 32
  %v751 = vpop.permute.xlu0 %750
  %vm752 = vcmask 130048
  %s753 = scalar_lea.vmem %s1, 390
  %754 = vst.msk [vmem:[%s753] ss:$8 sm:$0xf] %vm752, %v751
  %s755 = scalar_lea.vmem %s1, 390
  %756 = vst.msk [vmem:[%s755] ss:$8 sm:$0xf0] %vm752, %v751
  %s757 = scalar_lea.vmem %s0, 38
  %v758 = vld [vmem:[%s757] ss:$8 sm:$0xf]
  %s759 = scalar_lea.vmem %s0, 7
  %v760 = vld [vmem:[%s759] ss:$8 sm:$0xf0]
  %vm761 = vcmask 1047556
  %v762 = vsel %vm761, %v760, %v758
  %763 = vrot.lane.b32.xlu0 %v762, 32
  %v764 = vpop.permute.xlu0 %763
  %vm765 = vcmask 130048
  %s766 = scalar_lea.vmem %s1, 454
  %767 = vst.msk [vmem:[%s766] ss:$8 sm:$0xf] %vm765, %v764
  %s768 = scalar_lea.vmem %s1, 454
  %769 = vst.msk [vmem:[%s768] ss:$8 sm:$0xf0] %vm765, %v764
  %v770 = vld [vmem:[%s0] ss:$8 sm:$0xf]
  %s771 = scalar_lea.vmem %s0, 4294967265
  %v772 = vld [vmem:[%s771] ss:$8 sm:$0xf0]
  %vm773 = vcmask 1047556
  %v774 = vsel %vm773, %v772, %v770
  %775 = vrot.lane.b32.xlu0 %v774, 16
  %v776 = vpop.permute.xlu0 %775
  %vm777 = vcmask 130048
  %s778 = scalar_lea.vmem %s1, 7
  %779 = vst.msk [vmem:[%s778] ss:$8 sm:$0xf] %vm777, %v776
  %s780 = scalar_lea.vmem %s1, 7
  %781 = vst.msk [vmem:[%s780] ss:$8 sm:$0xf0] %vm777, %v776
  %s782 = scalar_lea.vmem %s0, 2
  %v783 = vld [vmem:[%s782] ss:$8 sm:$0xf]
  %s784 = scalar_lea.vmem %s0, 4294967267
  %v785 = vld [vmem:[%s784] ss:$8 sm:$0xf0]
  %vm786 = vcmask 1047556
  %v787 = vsel %vm786, %v785, %v783
  %788 = vrot.lane.b32.xlu0 %v787, 16
  %v789 = vpop.permute.xlu0 %788
  %vm790 = vcmask 130048
  %s791 = scalar_lea.vmem %s1, 71
  %792 = vst.msk [vmem:[%s791] ss:$8 sm:$0xf] %vm790, %v789
  %s793 = scalar_lea.vmem %s1, 71
  %794 = vst.msk [vmem:[%s793] ss:$8 sm:$0xf0] %vm790, %v789
  %s795 = scalar_lea.vmem %s0, 4
  %v796 = vld [vmem:[%s795] ss:$8 sm:$0xf]
  %s797 = scalar_lea.vmem %s0, 4294967269
  %v798 = vld [vmem:[%s797] ss:$8 sm:$0xf0]
  %vm799 = vcmask 1047556
  %v800 = vsel %vm799, %v798, %v796
  %801 = vrot.lane.b32.xlu0 %v800, 16
  %v802 = vpop.permute.xlu0 %801
  %vm803 = vcmask 130048
  %s804 = scalar_lea.vmem %s1, 135
  %805 = vst.msk [vmem:[%s804] ss:$8 sm:$0xf] %vm803, %v802
  %s806 = scalar_lea.vmem %s1, 135
  %807 = vst.msk [vmem:[%s806] ss:$8 sm:$0xf0] %vm803, %v802
  %s808 = scalar_lea.vmem %s0, 6
  %v809 = vld [vmem:[%s808] ss:$8 sm:$0xf]
  %s810 = scalar_lea.vmem %s0, 4294967271
  %v811 = vld [vmem:[%s810] ss:$8 sm:$0xf0]
  %vm812 = vcmask 1047556
  %v813 = vsel %vm812, %v811, %v809
  %814 = vrot.lane.b32.xlu0 %v813, 16
  %v815 = vpop.permute.xlu0 %814
  %vm816 = vcmask 130048
  %s817 = scalar_lea.vmem %s1, 199
  %818 = vst.msk [vmem:[%s817] ss:$8 sm:$0xf] %vm816, %v815
  %s819 = scalar_lea.vmem %s1, 199
  %820 = vst.msk [vmem:[%s819] ss:$8 sm:$0xf0] %vm816, %v815
  %s821 = scalar_lea.vmem %s0, 32
  %v822 = vld [vmem:[%s821] ss:$8 sm:$0xf]
  %s823 = scalar_lea.vmem %s0, 1
  %v824 = vld [vmem:[%s823] ss:$8 sm:$0xf0]
  %vm825 = vcmask 1047556
  %v826 = vsel %vm825, %v824, %v822
  %827 = vrot.lane.b32.xlu0 %v826, 16
  %v828 = vpop.permute.xlu0 %827
  %vm829 = vcmask 130048
  %s830 = scalar_lea.vmem %s1, 263
  %831 = vst.msk [vmem:[%s830] ss:$8 sm:$0xf] %vm829, %v828
  %s832 = scalar_lea.vmem %s1, 263
  %833 = vst.msk [vmem:[%s832] ss:$8 sm:$0xf0] %vm829, %v828
  %s834 = scalar_lea.vmem %s0, 34
  %v835 = vld [vmem:[%s834] ss:$8 sm:$0xf]
  %s836 = scalar_lea.vmem %s0, 3
  %v837 = vld [vmem:[%s836] ss:$8 sm:$0xf0]
  %vm838 = vcmask 1047556
  %v839 = vsel %vm838, %v837, %v835
  %840 = vrot.lane.b32.xlu0 %v839, 16
  %v841 = vpop.permute.xlu0 %840
  %vm842 = vcmask 130048
  %s843 = scalar_lea.vmem %s1, 327
  %844 = vst.msk [vmem:[%s843] ss:$8 sm:$0xf] %vm842, %v841
  %s845 = scalar_lea.vmem %s1, 327
  %846 = vst.msk [vmem:[%s845] ss:$8 sm:$0xf0] %vm842, %v841
  %s847 = scalar_lea.vmem %s0, 36
  %v848 = vld [vmem:[%s847] ss:$8 sm:$0xf]
  %s849 = scalar_lea.vmem %s0, 5
  %v850 = vld [vmem:[%s849] ss:$8 sm:$0xf0]
  %vm851 = vcmask 1047556
  %v852 = vsel %vm851, %v850, %v848
  %853 = vrot.lane.b32.xlu0 %v852, 16
  %v854 = vpop.permute.xlu0 %853
  %vm855 = vcmask 130048
  %s856 = scalar_lea.vmem %s1, 391
  %857 = vst.msk [vmem:[%s856] ss:$8 sm:$0xf] %vm855, %v854
  %s858 = scalar_lea.vmem %s1, 391
  %859 = vst.msk [vmem:[%s858] ss:$8 sm:$0xf0] %vm855, %v854
  %s860 = scalar_lea.vmem %s0, 38
  %v861 = vld [vmem:[%s860] ss:$8 sm:$0xf]
  %s862 = scalar_lea.vmem %s0, 7
  %v863 = vld [vmem:[%s862] ss:$8 sm:$0xf0]
  %vm864 = vcmask 1047556
  %v865 = vsel %vm864, %v863, %v861
  %866 = vrot.lane.b32.xlu0 %v865, 16
  %v867 = vpop.permute.xlu0 %866
  %vm868 = vcmask 130048
  %s869 = scalar_lea.vmem %s1, 455
  %870 = vst.msk [vmem:[%s869] ss:$8 sm:$0xf] %vm868, %v867
  %s871 = scalar_lea.vmem %s1, 455
  %872 = vst.msk [vmem:[%s871] ss:$8 sm:$0xf0] %vm868, %v867

// kernel: psconv_forward.3
$region0: #{psconv_forward.3}
  #allocation0 [shape = 'u32[]', space=smem, size = 0x4, offset = 0x4, fixed_abs, tag = 'smem constant byte address 0x4 - core index']
  #allocation1 [shape = 'u32[72,128]{1,0:T(1,128)}', space=vmem, size = 0x9000, scoped, tag = 'internal scratch']
  %s0 = inlined_call_operand.vmem [shape: f32[1,64,512], index: 0, kind: input, shape index: {}]
  %s1 = inlined_call_operand.vmem [shape: f32[1,16,64], index: 1, kind: input, shape index: {}]
  %s2 = inlined_call_operand.vmem [shape: f32[1,16,1], index: 2, kind: input, shape index: {}]
  %s3 = inlined_call_operand.vmem [shape: f32[1,16,512], index: 3, kind: output, shape index: {}]
  %s4 = sld [smem:[#allocation0]]
  $region87: #{psconv_forward.3} parent=0
    _
  %s6 = ssub.s32 1, %s4
  %s7 = scalar_select 0, %s6, %s4
  $region1: #{psconv_forward.3} parent=0
    #allocation2 [shape = 'u8[131072]{0}', space=vmem, size = 0x20000, scoped, tag = 'input window, operand 0']
    #allocation3 [shape = 'u8[32768]{0}', space=vmem, size = 0x8000, scoped, tag = 'output window, operand 0']
    loop: start=0, step=1, limit=4
    $region2: #{psconv_forward.3} parent=1 // loop_pre_header
      _
    $region3: #{psconv_forward.3} parent=1 // loop_header
      %s9 = sphi 0, %s13
      %p10 = scmp.ge.s32.totalorder %s9, 4
      %s16 = sphi 0, %s28
      %s17 = sphi 0, %s24
      %s18 = sphi 0, %s16
      %s19 = sphi 0, %s17
      %s20 = sphi 0, %s18
      %s21 = sphi 0, %s19
      %s33 = sphi 0, %s35
      %s36 = sphi 0, %s33
      %s37 = sphi 0, %s36
      %s53 = sphi 0, %s37
      %s59 = sphi 0, %s61
      %s62 = sphi 0, %s59
      %s63 = sphi 0, %s62
      %s79 = sphi 0, %s63
      %s85 = sphi 0, %s87
      %s88 = sphi 0, %s85
      %s89 = sphi 0, %s88
      %s105 = sphi 0, %s89
      %s113 = sphi 0, %s115
      %s116 = sphi 0, %s113
      %s117 = sphi 0, %s116
      %s133 = sphi 0, %s117
    $region4: #{psconv_forward.3} parent=1 // loop_header_branch
      %12 = sbr.rel (%p10) target = $region8
    $region5: #{psconv_forward.3} parent=1 // loop_body
      %s14 = ssub.s32 %s9, 1
      %s15 = ssub.s32 %s9, 2
      %s22 = sadd.s32 1, %s17
      %p23 = scmp.ge.s32.totalorder %s22, 2
      %s24 = scalar_select %p23, 0, %s22
      %s25 = sadd.s32 1, %s16
      %s26 = scalar_select %p23, %s25, %s16
      %p27 = scmp.ge.s32.totalorder %s26, 1
      %s28 = scalar_select %p27, 0, %s26
      %s29 = ssub.s32 %s16, %s28
      %s30 = ssub.s32 %s17, %s24
      %s31 = sor.u32 %s29, %s30
      %p32 = scmp.eq.s32.totalorder %s31, 0
      %s34 = sadd.s32 %s33, 1
      %s35 = scalar_select %p32, %s33, %s34
      %p38 = pneg %p32
      %p39 = scmp.eq.s32.totalorder %s9, 1
      %p40 = por %p38, %p39
      %p41 = scmp.ne.s32.totalorder %s33, %s36
      %p42 = scmp.eq.s32.totalorder %s9, 0
      %p43 = por %p41, %p42
      %p44 = scmp.ne.s32.totalorder %s33, %s36
      %p45 = scmp.eq.s32.totalorder %s14, 1
      %p46 = por %p44, %p45
      %p47 = scmp.ne.s32.totalorder %s36, %s37
      %p48 = scmp.eq.s32.totalorder %s14, 0
      %p49 = por %p47, %p48
      %p50 = scmp.ne.s32.totalorder %s36, %s37
      %p51 = scmp.eq.s32.totalorder %s15, 1
      %p52 = por %p50, %p51
      %p54 = scmp.ne.s32.totalorder %s37, %s53
      %p55 = scmp.eq.s32.totalorder %s15, 0
      %p56 = por %p54, %p55
      %s57 = ssub.s32 %s16, %s28
      %p58 = scmp.eq.s32.totalorder %s57, 0
      %s60 = sadd.s32 %s59, 1
      %s61 = scalar_select %p58, %s59, %s60
      %p64 = pneg %p58
      %p65 = scmp.eq.s32.totalorder %s9, 1
      %p66 = por %p64, %p65
      %p67 = scmp.ne.s32.totalorder %s59, %s62
      %p68 = scmp.eq.s32.totalorder %s9, 0
      %p69 = por %p67, %p68
      %p70 = scmp.ne.s32.totalorder %s59, %s62
      %p71 = scmp.eq.s32.totalorder %s14, 1
      %p72 = por %p70, %p71
      %p73 = scmp.ne.s32.totalorder %s62, %s63
      %p74 = scmp.eq.s32.totalorder %s14, 0
      %p75 = por %p73, %p74
      %p76 = scmp.ne.s32.totalorder %s62, %s63
      %p77 = scmp.eq.s32.totalorder %s15, 1
      %p78 = por %p76, %p77
      %p80 = scmp.ne.s32.totalorder %s63, %s79
      %p81 = scmp.eq.s32.totalorder %s15, 0
      %p82 = por %p80, %p81
      %s83 = ssub.s32 %s16, %s28
      %p84 = scmp.eq.s32.totalorder %s83, 0
      %s86 = sadd.s32 %s85, 1
      %s87 = scalar_select %p84, %s85, %s86
      %p90 = pneg %p84
      %p91 = scmp.eq.s32.totalorder %s9, 1
      %p92 = por %p90, %p91
      %p93 = scmp.ne.s32.totalorder %s85, %s88
      %p94 = scmp.eq.s32.totalorder %s9, 0
      %p95 = por %p93, %p94
      %p96 = scmp.ne.s32.totalorder %s85, %s88
      %p97 = scmp.eq.s32.totalorder %s14, 1
      %p98 = por %p96, %p97
      %p99 = scmp.ne.s32.totalorder %s88, %s89
      %p100 = scmp.eq.s32.totalorder %s14, 0
      %p101 = por %p99, %p100
      %p102 = scmp.ne.s32.totalorder %s88, %s89
      %p103 = scmp.eq.s32.totalorder %s15, 1
      %p104 = por %p102, %p103
      %p106 = scmp.ne.s32.totalorder %s89, %s105
      %p107 = scmp.eq.s32.totalorder %s15, 0
      %p108 = por %p106, %p107
      %s109 = ssub.s32 %s16, %s28
      %s110 = ssub.s32 %s17, %s24
      %s111 = sor.u32 %s109, %s110
      %p112 = scmp.eq.s32.totalorder %s111, 0
      %s114 = sadd.s32 %s113, 1
      %s115 = scalar_select %p112, %s113, %s114
      %p118 = pneg %p112
      %p119 = scmp.eq.s32.totalorder %s9, 1
      %p120 = por %p118, %p119
      %p121 = scmp.ne.s32.totalorder %s113, %s116
      %p122 = scmp.eq.s32.totalorder %s9, 0
      %p123 = por %p121, %p122
      %p124 = scmp.ne.s32.totalorder %s113, %s116
      %p125 = scmp.eq.s32.totalorder %s14, 1
      %p126 = por %p124, %p125
      %p127 = scmp.ne.s32.totalorder %s116, %s117
      %p128 = scmp.eq.s32.totalorder %s14, 0
      %p129 = por %p127, %p128
      %p130 = scmp.ne.s32.totalorder %s116, %s117
      %p131 = scmp.eq.s32.totalorder %s15, 1
      %p132 = por %p130, %p131
      %p134 = scmp.ne.s32.totalorder %s117, %s133
      %p135 = scmp.eq.s32.totalorder %s15, 0
      %p136 = por %p134, %p135
      %p137 = scmp.le.s32.totalorder 1, %s9
      %p138 = scmp.lt.s32.totalorder %s9, 3
      %p139 = pnand %p137, %p138
      %p140 = pneg %p139
      // Predicated region
      $region9: #{psconv_forward.3} parent=5 // pred_check
        _
      $region10: #{psconv_forward.3} parent=5 // pred_check_branch
        %142 = sbr.rel (%p139) target = $region12
      $region11: #{psconv_forward.3} parent=5 // pred_region
        %s143 = ssub.s32 %s9, 1
        // Predicated region
        $region13: #{psconv_forward.3} parent=11 // pred_check
          %p144 = pneg %p75
        $region14: #{psconv_forward.3} parent=11 // pred_check_branch
          %146 = sbr.rel (%p144) target = $region16
        $region15: #{psconv_forward.3} parent=11 // pred_region
          %p147 = scmp.lt.s32.totalorder %s18, 0
          %s148 = scalar_select %p147, %s18, 0
          %s149 = smul.addr %s148, 2
          %s150 = smul.addr %s149, 8
          %s151 = scalar_lea.vmem %s1, %s150
        $region16: #{psconv_forward.3} parent=11 // pred_fallthru
          _
        // Predicated region
        $region17: #{psconv_forward.3} parent=11 // pred_check
          %p152 = pneg %p101
        $region18: #{psconv_forward.3} parent=11 // pred_check_branch
          %154 = sbr.rel (%p152) target = $region20
        $region19: #{psconv_forward.3} parent=11 // pred_region
          %p155 = scmp.lt.s32.totalorder %s18, 0
          %s156 = scalar_select %p155, %s18, 0
          %s157 = smul.addr %s156, 2
          %s158 = smul.addr %s157, 8
          %s159 = scalar_lea.vmem %s2, %s158
        $region20: #{psconv_forward.3} parent=11 // pred_fallthru
          _
      $region12: #{psconv_forward.3} parent=5 // pred_fallthru
        _
      %p160 = scmp.lt.s32.totalorder %s9, 2
      // Predicated region
      $region21: #{psconv_forward.3} parent=5 // pred_check
        %p161 = pneg %p160
      $region22: #{psconv_forward.3} parent=5 // pred_check_branch
        %163 = sbr.rel (%p161) target = $region24
      $region23: #{psconv_forward.3} parent=5 // pred_region
        // Predicated region
        $region25: #{psconv_forward.3} parent=23 // pred_check
          %p164 = pneg %p43
        $region26: #{psconv_forward.3} parent=23 // pred_check_branch
          %166 = sbr.rel (%p164) target = $region28
        $region27: #{psconv_forward.3} parent=23 // pred_region
          %s167 = sand.u32 %s33, 1
          %s168 = sand.u32 %s33, 1
          %s169 = smul.addr %s168, 128
          %s170 = scalar_lea.vmem [#allocation2], %s169
          %s171 = smul.u32 2, %s17
          %s172 = smul.addr %s16, 32
          %s173 = sadd.s32 %s171, %s172
          %s174 = smul.addr %s173, 8
          %s175 = scalar_lea.vmem %s0, %s174
          // Predicated region
          $region29: #{psconv_forward.3} parent=27 // pred_check
            _
          $region30: #{psconv_forward.3} parent=27 // pred_check_branch
            %177 = sbr.rel (0) target = $region32
          $region31: #{psconv_forward.3} parent=27 // pred_region
            // Predicated region
            $region33: #{psconv_forward.3} parent=31 // pred_check
              _
            $region34: #{psconv_forward.3} parent=31 // pred_check_branch
              %179 = sbr.rel (0) target = $region36
            $region35: #{psconv_forward.3} parent=31 // pred_region
              loop: start=0, step=1, limit=1
              $region37: #{psconv_forward.3} parent=35 // loop_pre_header
                _
              $region38: #{psconv_forward.3} parent=35 // loop_header
                %s181 = sphi 0, %s185
                %p182 = scmp.ge.s32.totalorder %s181, 1
                %s186 = sphi %s175, %s175
                %s187 = sphi %s170, %s170
              $region39: #{psconv_forward.3} parent=35 // loop_header_branch
                %184 = sbr.rel (%p182) target = $region43
              $region40: #{psconv_forward.3} parent=35 // loop_body
                %v188 = vld [vmem:[%s186] sm:$0xff]
                %189 = vst [vmem:[%s187] sm:$0xff] %v188
                %v190 = vld [vmem:[%s186 + $0x8] sm:$0xff]
                %191 = vst [vmem:[%s187 + $0x8] sm:$0xff] %v190
                %v192 = vld [vmem:[%s186 + $0x20] sm:$0xff]
                %193 = vst [vmem:[%s187 + $0x10] sm:$0xff] %v192
                %v194 = vld [vmem:[%s186 + $0x28] sm:$0xff]
                %195 = vst [vmem:[%s187 + $0x18] sm:$0xff] %v194
                %v196 = vld [vmem:[%s186 + $0x40] sm:$0xff]
                %197 = vst [vmem:[%s187 + $0x20] sm:$0xff] %v196
                %v198 = vld [vmem:[%s186 + $0x48] sm:$0xff]
                %199 = vst [vmem:[%s187 + $0x28] sm:$0xff] %v198
                %v200 = vld [vmem:[%s186 + $0x60] sm:$0xff]
                %201 = vst [vmem:[%s187 + $0x30] sm:$0xff] %v200
                %v202 = vld [vmem:[%s186 + $0x68] sm:$0xff]
                %203 = vst [vmem:[%s187 + $0x38] sm:$0xff] %v202
                %v204 = vld [vmem:[%s186 + $0x80] sm:$0xff]
                %205 = vst [vmem:[%s187 + $0x40] sm:$0xff] %v204
                %v206 = vld [vmem:[%s186 + $0x88] sm:$0xff]
                %207 = vst [vmem:[%s187 + $0x48] sm:$0xff] %v206
                %v208 = vld [vmem:[%s186 + $0xa0] sm:$0xff]
                %209 = vst [vmem:[%s187 + $0x50] sm:$0xff] %v208
                %v210 = vld [vmem:[%s186 + $0xa8] sm:$0xff]
                %211 = vst [vmem:[%s187 + $0x58] sm:$0xff] %v210
                %v212 = vld [vmem:[%s186 + $0xc0] sm:$0xff]
                %213 = vst [vmem:[%s187 + $0x60] sm:$0xff] %v212
                %v214 = vld [vmem:[%s186 + $0xc8] sm:$0xff]
                %215 = vst [vmem:[%s187 + $0x68] sm:$0xff] %v214
                %v216 = vld [vmem:[%s186 + $0xe0] sm:$0xff]
                %217 = vst [vmem:[%s187 + $0x70] sm:$0xff] %v216
                %v218 = vld [vmem:[%s186 + $0xe8] sm:$0xff]
                %219 = vst [vmem:[%s187 + $0x78] sm:$0xff] %v218
              $region41: #{psconv_forward.3} parent=35 // loop_footer
                %s185 = sadd.s32 1, %s181
              $region42: #{psconv_forward.3} parent=35 // loop_footer_branch
                %180 = sbr.rel target = $region38
              $region43: #{psconv_forward.3} parent=35 // loop_exit
                _
            $region36: #{psconv_forward.3} parent=31 // pred_fallthru
              _
            // Predicated region
            $region44: #{psconv_forward.3} parent=31 // pred_check
              _
            $region45: #{psconv_forward.3} parent=31 // pred_check_branch
              %221 = sbr.rel target = $region47
            $region46: #{psconv_forward.3} parent=31 // pred_region
              _
            $region47: #{psconv_forward.3} parent=31 // pred_fallthru
              _
          $region32: #{psconv_forward.3} parent=27 // pred_fallthru
            _
          %222 = vnop
        $region28: #{psconv_forward.3} parent=23 // pred_fallthru
          _
      $region24: #{psconv_forward.3} parent=5 // pred_fallthru
        _
      %p223 = scmp.le.s32.totalorder 1, %s9
      %p224 = scmp.lt.s32.totalorder %s9, 3
      %p225 = pnand %p223, %p224
      %p226 = pneg %p225
      // Predicated region
      $region48: #{psconv_forward.3} parent=5 // pred_check
        _
      $region49: #{psconv_forward.3} parent=5 // pred_check_branch
        %228 = sbr.rel (%p225) target = $region51
      $region50: #{psconv_forward.3} parent=5 // pred_region
        %s229 = ssub.s32 %s9, 1
        %s230 = sand.u32 %s36, 1
        %s231 = sand.u32 %s36, 1
        %s232 = smul.addr %s231, 128
        %s233 = scalar_lea.vmem [#allocation2], %s232
        // Predicated region
        $region52: #{psconv_forward.3} parent=50 // pred_check
          %p234 = pneg %p49
        $region53: #{psconv_forward.3} parent=50 // pred_check_branch
          %236 = sbr.rel (%p234) target = $region55
        $region54: #{psconv_forward.3} parent=50 // pred_region
          _
        $region55: #{psconv_forward.3} parent=50 // pred_fallthru
          _
        %s237 = sand.u32 %s36, 1
        %s238 = sand.u32 %s36, 1
        %s239 = smul.addr %s238, 128
        %s240 = scalar_lea.vmem [#allocation2], %s239
        %p241 = pneg %p49
        %p242 = pneg %p46
        %p243 = scmp.lt.s32.totalorder %s18, 0
        %s244 = scalar_select %p243, %s18, 0
        %s245 = smul.addr %s244, 2
        %s246 = smul.addr %s245, 8
        %s247 = scalar_lea.vmem %s1, %s246
        %p248 = pneg %p75
        %p249 = pneg %p72
        %p250 = scmp.lt.s32.totalorder %s18, 0
        %s251 = scalar_select %p250, %s18, 0
        %s252 = smul.addr %s251, 2
        %s253 = smul.addr %s252, 8
        %s254 = scalar_lea.vmem %s2, %s253
        %p255 = pneg %p101
        %p256 = pneg %p98
        %p257 = pneg %p129
        %p258 = pneg %p126
        %s259 = sand.u32 %s116, 1
        %s260 = sand.u32 %s116, 1
        %s261 = smul.addr %s260, 32
        %s262 = scalar_lea.vmem [#allocation3], %s261
        %s263 = smul.u32 2, %s19
        %p264 = scmp.lt.s32.totalorder %s18, 0
        %s265 = scalar_select %p264, %s18, 0
        %s266 = smul.addr %s265, 2
        %s267 = smul.addr %s266, 8
        %s268 = scalar_lea.vmem %s1, %s267
        %p269 = scmp.lt.s32.totalorder %s18, 0
        %s270 = scalar_select %p269, %s18, 0
        %s271 = smul.addr %s270, 2
        %s272 = smul.addr %s271, 8
        %s273 = scalar_lea.vmem %s2, %s272
        %s274 = smul.u32 2, %s19
        %v275 = vld [vmem:[%s268] sm:$0xff]
        %v276 = vld [vmem:[%s268 + $0x8] sm:$0xff]
        %v277 = vld [vmem:[%s233] sm:$0xff]
        %v278 = vld [vmem:[%s233 + $0x8] sm:$0xff]
        %v279 = vld [vmem:[%s233 + $0x10] sm:$0xff]
        %v280 = vld [vmem:[%s233 + $0x18] sm:$0xff]
        %v281 = vld [vmem:[%s233 + $0x20] sm:$0xff]
        %v282 = vld [vmem:[%s233 + $0x28] sm:$0xff]
        %v283 = vld [vmem:[%s233 + $0x30] sm:$0xff]
        %v284 = vld [vmem:[%s233 + $0x38] sm:$0xff]
        %v285 = vld [vmem:[%s233 + $0x40] sm:$0xff]
        %v286 = vld [vmem:[%s233 + $0x48] sm:$0xff]
        %v287 = vld [vmem:[%s233 + $0x50] sm:$0xff]
        %v288 = vld [vmem:[%s233 + $0x58] sm:$0xff]
        %v289 = vld [vmem:[%s233 + $0x60] sm:$0xff]
        %v290 = vld [vmem:[%s233 + $0x68] sm:$0xff]
        %v291 = vld [vmem:[%s233 + $0x70] sm:$0xff]
        %v292 = vld [vmem:[%s233 + $0x78] sm:$0xff]
        %v293 = vld [vmem:[%s273] sm:$0xff]
        %v294 = vld [vmem:[%s273 + $0x8] sm:$0xff]
        %296 = vset.pattern.permute.xlu0 0
        %297 = vperm.xlu0 %296, %v293
        %v298 = vpop.permute.xlu0 %297
        %301 = vset.pattern.permute.xlu0 0
        %302 = vperm.xlu0 %301, %v294
        %v303 = vpop.permute.xlu0 %302
        %vm305 = vcmask 523264
        %v307 = vsel %vm305, %v275, 0
        %v310 = vsel %vm305, %v276, 0
        %312 = vmatpush.msra.mxu0 0.0
        %313 = vmatpush.msra.mxu0 0.0
        %314 = vmatpush.msra.mxu0 0.0
        %315 = vmatpush.msra.mxu0 0.0
        %316 = vmatpush.msra.mxu0 0.0
        %317 = vmatpush.msra.mxu0 0.0
        %318 = vmatpush.msra.mxu0 0.0
        %319 = vmatpush.msra.mxu0 0.0
        %320 = vmatpush.msra.mxu0 %v291
        %321 = vmatpush.msra.mxu0 %v289
        %322 = vmatpush.msra.mxu0 %v287
        %323 = vmatpush.msra.mxu0 %v285
        %324 = vmatpush.msra.mxu0 %v283
        %325 = vmatpush.msra.mxu0 %v281
        %326 = vmatpush.msra.mxu0 %v279
        %327 = vmatpush.msra.mxu0 %v277
        %328 = vmatmul.f32.gmra.mxu0 %v307
        %v329 = vpop.f32.mrf.mxu0
        %v330 = vadd.f32 %v298, %v329
        %331 = vmatmul.f32.gmra.mxu0 %v310
        %v332 = vpop.f32.mrf.mxu0
        %v333 = vadd.f32 %v303, %v332
        %334 = vdwg.mxu0
        %335 = vmatpush.msra.mxu0 0.0
        %336 = vmatpush.msra.mxu0 0.0
        %337 = vmatpush.msra.mxu0 0.0
        %338 = vmatpush.msra.mxu0 0.0
        %339 = vmatpush.msra.mxu0 0.0
        %340 = vmatpush.msra.mxu0 0.0
        %341 = vmatpush.msra.mxu0 0.0
        %342 = vmatpush.msra.mxu0 0.0
        %343 = vmatpush.msra.mxu0 %v292
        %344 = vmatpush.msra.mxu0 %v290
        %345 = vmatpush.msra.mxu0 %v288
        %346 = vmatpush.msra.mxu0 %v286
        %347 = vmatpush.msra.mxu0 %v284
        %348 = vmatpush.msra.mxu0 %v282
        %349 = vmatpush.msra.mxu0 %v280
        %350 = vmatpush.msra.mxu0 %v278
        %351 = vmatmul.f32.gmra.mxu0 %v307
        %v352 = vpop.f32.mrf.mxu0
        %v353 = vadd.f32 %v298, %v352
        %354 = vmatmul.f32.gmra.mxu0 %v310
        %v355 = vpop.f32.mrf.mxu0
        %v356 = vadd.f32 %v303, %v355
        %357 = vdwg.mxu0
        %v358 = vxor.u32 %v330, 2147483648
        %v359 = vxor.u32 %v353, 2147483648
        %v360 = vxor.u32 %v333, 2147483648
        %v361 = vxor.u32 %v356, 2147483648
        %v362 = vmul.f32 %v358, 1.442695
        %v363 = vpow.pop %v362
        %v364 = vmul.f32 %v359, 1.442695
        %v365 = vpow.pop %v364
        %v366 = vmul.f32 %v360, 1.442695
        %v367 = vpow.pop %v366
        %v368 = vmul.f32 %v361, 1.442695
        %v369 = vpow.pop %v368
        %v370 = vadd.f32 %v363, 1.0
        %v371 = vadd.f32 %v365, 1.0
        %v372 = vadd.f32 %v367, 1.0
        %v373 = vadd.f32 %v369, 1.0
        %v374 = vrcp.pop %v370
        %v375 = vmul.f32 %v370, %v374
        %v376 = vsub.f32 1.0, %v375
        %v377 = vmul.f32 %v374, %v376
        %v378 = vadd.f32 %v374, %v377
        %vm379 = vweird.f32 %v370
        %vm380 = vweird.f32 %v374
        %vm381 = vmor %vm379, %vm380
        %v382 = vsel %vm381, %v374, %v378
        %v383 = vand.u32 2147483647, %v370
        %vm384 = vcmp.eq.f32.partialorder %v383, 8.507059e+37
        %v385 = vand.u32 %v370, 2147483648
        %v386 = vor.u32 1.1754944e-38, %v385
        %v387 = vsel %vm384, %v386, %v382
        %v388 = vmul.f32 1.0, %v387
        %v389 = vrcp.pop %v371
        %v390 = vmul.f32 %v371, %v389
        %v391 = vsub.f32 1.0, %v390
        %v392 = vmul.f32 %v389, %v391
        %v393 = vadd.f32 %v389, %v392
        %vm394 = vweird.f32 %v371
        %vm395 = vweird.f32 %v389
        %vm396 = vmor %vm394, %vm395
        %v397 = vsel %vm396, %v389, %v393
        %v398 = vand.u32 2147483647, %v371
        %vm399 = vcmp.eq.f32.partialorder %v398, 8.507059e+37
        %v400 = vand.u32 %v371, 2147483648
        %v401 = vor.u32 1.1754944e-38, %v400
        %v402 = vsel %vm399, %v401, %v397
        %v403 = vmul.f32 1.0, %v402
        %v404 = vrcp.pop %v372
        %v405 = vmul.f32 %v372, %v404
        %v406 = vsub.f32 1.0, %v405
        %v407 = vmul.f32 %v404, %v406
        %v408 = vadd.f32 %v404, %v407
        %vm409 = vweird.f32 %v372
        %vm410 = vweird.f32 %v404
        %vm411 = vmor %vm409, %vm410
        %v412 = vsel %vm411, %v404, %v408
        %v413 = vand.u32 2147483647, %v372
        %vm414 = vcmp.eq.f32.partialorder %v413, 8.507059e+37
        %v415 = vand.u32 %v372, 2147483648
        %v416 = vor.u32 1.1754944e-38, %v415
        %v417 = vsel %vm414, %v416, %v412
        %v418 = vmul.f32 1.0, %v417
        %v419 = vrcp.pop %v373
        %v420 = vmul.f32 %v373, %v419
        %v421 = vsub.f32 1.0, %v420
        %v422 = vmul.f32 %v419, %v421
        %v423 = vadd.f32 %v419, %v422
        %vm424 = vweird.f32 %v373
        %vm425 = vweird.f32 %v419
        %vm426 = vmor %vm424, %vm425
        %v427 = vsel %vm426, %v419, %v423
        %v428 = vand.u32 2147483647, %v373
        %vm429 = vcmp.eq.f32.partialorder %v428, 8.507059e+37
        %v430 = vand.u32 %v373, 2147483648
        %v431 = vor.u32 1.1754944e-38, %v430
        %v432 = vsel %vm429, %v431, %v427
        %v433 = vmul.f32 1.0, %v432
        %v434 = vmul.f32 %v330, %v388
        %v435 = vmul.f32 %v353, %v403
        %v436 = vmul.f32 %v333, %v418
        %v437 = vmul.f32 %v356, %v433
        %438 = vst [vmem:[%s262] sm:$0xff] %v434
        %439 = vst [vmem:[%s262 + $0x8] sm:$0xff] %v435
        %440 = vst [vmem:[%s262 + $0x10] sm:$0xff] %v436
        %441 = vst [vmem:[%s262 + $0x18] sm:$0xff] %v437
        %s442 = sand.u32 %s116, 1
        %s443 = sand.u32 %s116, 1
        %s444 = smul.addr %s443, 32
        %s445 = scalar_lea.vmem [#allocation3], %s444
        // Predicated region
        $region56: #{psconv_forward.3} parent=50 // pred_check
          %p446 = pneg %p126
        $region57: #{psconv_forward.3} parent=50 // pred_check_branch
          %448 = sbr.rel (%p446) target = $region59
        $region58: #{psconv_forward.3} parent=50 // pred_region
          %s449 = smul.u32 2, %s19
          %s450 = smul.addr %s18, 8
          %s451 = sadd.s32 %s449, %s450
          %s452 = smul.addr %s451, 8
          %s453 = scalar_lea.vmem %s3, %s452
          // Predicated region
          $region60: #{psconv_forward.3} parent=58 // pred_check
            _
          $region61: #{psconv_forward.3} parent=58 // pred_check_branch
            %455 = sbr.rel (0) target = $region63
          $region62: #{psconv_forward.3} parent=58 // pred_region
            // Predicated region
            $region64: #{psconv_forward.3} parent=62 // pred_check
              _
            $region65: #{psconv_forward.3} parent=62 // pred_check_branch
              %457 = sbr.rel (0) target = $region67
            $region66: #{psconv_forward.3} parent=62 // pred_region
              loop: start=0, step=1, limit=1
              $region68: #{psconv_forward.3} parent=66 // loop_pre_header
                _
              $region69: #{psconv_forward.3} parent=66 // loop_header
                %s459 = sphi 0, %s463
                %p460 = scmp.ge.s32.totalorder %s459, 1
                %s464 = sphi %s445, %s445
                %s465 = sphi %s453, %s453
              $region70: #{psconv_forward.3} parent=66 // loop_header_branch
                %462 = sbr.rel (%p460) target = $region74
              $region71: #{psconv_forward.3} parent=66 // loop_body
                %v466 = vld [vmem:[%s464] sm:$0xff]
                %467 = vst [vmem:[%s465] sm:$0xff] %v466
                %v468 = vld [vmem:[%s464 + $0x8] sm:$0xff]
                %469 = vst [vmem:[%s465 + $0x8] sm:$0xff] %v468
                %v470 = vld [vmem:[%s464 + $0x10] sm:$0xff]
                %471 = vst [vmem:[%s465 + $0x20] sm:$0xff] %v470
                %v472 = vld [vmem:[%s464 + $0x18] sm:$0xff]
                %473 = vst [vmem:[%s465 + $0x28] sm:$0xff] %v472
              $region72: #{psconv_forward.3} parent=66 // loop_footer
                %s463 = sadd.s32 1, %s459
              $region73: #{psconv_forward.3} parent=66 // loop_footer_branch
                %458 = sbr.rel target = $region69
              $region74: #{psconv_forward.3} parent=66 // loop_exit
                _
            $region67: #{psconv_forward.3} parent=62 // pred_fallthru
              _
            // Predicated region
            $region75: #{psconv_forward.3} parent=62 // pred_check
              _
            $region76: #{psconv_forward.3} parent=62 // pred_check_branch
              %475 = sbr.rel target = $region78
            $region77: #{psconv_forward.3} parent=62 // pred_region
              _
            $region78: #{psconv_forward.3} parent=62 // pred_fallthru
              _
          $region63: #{psconv_forward.3} parent=58 // pred_fallthru
            _
          %476 = vnop
        $region59: #{psconv_forward.3} parent=50 // pred_fallthru
          _
      $region51: #{psconv_forward.3} parent=5 // pred_fallthru
        _
      %p477 = scmp.le.s32.totalorder 2, %s9
      // Predicated region
      $region79: #{psconv_forward.3} parent=5 // pred_check
        %p478 = pneg %p477
      $region80: #{psconv_forward.3} parent=5 // pred_check_branch
        %480 = sbr.rel (%p478) target = $region82
      $region81: #{psconv_forward.3} parent=5 // pred_region
        %s481 = ssub.s32 %s9, 2
        // Predicated region
        $region83: #{psconv_forward.3} parent=81 // pred_check
          %p482 = pneg %p132
        $region84: #{psconv_forward.3} parent=81 // pred_check_branch
          %484 = sbr.rel (%p482) target = $region86
        $region85: #{psconv_forward.3} parent=81 // pred_region
          %s485 = sand.u32 %s117, 1
          %s486 = sand.u32 %s117, 1
          %s487 = smul.addr %s486, 32
          %s488 = scalar_lea.vmem [#allocation3], %s487
        $region86: #{psconv_forward.3} parent=81 // pred_fallthru
          _
      $region82: #{psconv_forward.3} parent=5 // pred_fallthru
        _
    $region6: #{psconv_forward.3} parent=1 // loop_footer
      %s13 = sadd.s32 1, %s9
    $region7: #{psconv_forward.3} parent=1 // loop_footer_branch
      %8 = sbr.rel target = $region3
    $region8: #{psconv_forward.3} parent=1 // loop_exit
      _

</llo_original>
